<compile_context>
chip_gen: v7x
topology: tpu7x:2x2x1
jax: 0.10.0
libtpu: 0.0.40
codegen_flags: <defaults>
</compile_context>

<pallas_src>
import jax
import jax.numpy as jnp
from jax.experimental import pallas as pl
from jax.experimental.pallas import tpu as pltpu


# ----------------------------- fused Pallas kernel ---------------------------


def _build_kernel(block_meta, lin_w_off, lin_b_off, *, B, T, K, C, O):
    """Kernel over the whole batch in one step.

    kernel(x_ref, w_ref, o_ref)
      x_ref : (B*T, C)   channel-padded, batch folded into rows (row = b*T + t)
      w_ref : (R, C)     packed weight slab (static row offsets in block_meta)
      o_ref : (O, B*T)   lane-dense output row(s); wrapper reshapes to (B,T,O)
    """
    BT = B * T

    def kernel(x_ref, w_ref, o_ref):
        h = x_ref[...]                                            # (BT, C) f32
        # Time-within-batch index, hoisted once; used to zero rows that a roll
        # would otherwise pull from "before t=0" / from the previous batch elem.
        t_pos = jax.lax.broadcasted_iota(jnp.int32, (BT, C), 0) % T

        def causal_conv_relu(h, w_off, b_off, d):
            # K accumulating matmuls; tap j sees the input shifted later in
            # time by s = d*(K-1-j) (in-register roll + causal mask).
            acc = w_ref[pl.ds(b_off, 1), :]                       # (1, C) bias
            for j in range(K):
                s = d * (K - 1 - j)
                wj = w_ref[pl.ds(w_off + j * C, C), :]            # (C, C)
                if s == 0:
                    hj = h
                else:
                    hj = jnp.where(t_pos >= s,
                                   pltpu.roll(h, shift=s, axis=0), 0.0)
                acc = acc + jnp.dot(hj, wj,
                                    preferred_element_type=jnp.float32)
            return jnp.maximum(acc, 0.0)                          # relu (dropout=id)

        for m in block_meta:
            d = m["dilation"]
            out = causal_conv_relu(h, m["w1"], m["b1"], d)        # conv1+chomp+relu
            out = causal_conv_relu(out, m["w2"], m["b2"], d)      # conv2+chomp+relu
            if m["has_down"]:                                     # 1x1 downsample
                wd = w_ref[pl.ds(m["wd"], C), :]                  # (C, C)
                bd = w_ref[pl.ds(m["bd"], 1), :]                  # (1, C)
                res = jnp.dot(h, wd, preferred_element_type=jnp.float32) + bd
            else:
                res = h
            h = jnp.maximum(out + res, 0.0)                       # residual + relu

        # Final Linear + Sigmoid, produced as a lane-dense (O, BT) row.
        w_rows = w_ref[pl.ds(lin_w_off, O), :]                    # (O, C) = lin_w.T
        lb = w_ref[pl.ds(lin_b_off, O), pl.ds(0, 1)]              # (O, 1)
        y = jnp.dot(w_rows, h.T, preferred_element_type=jnp.float32) + lb  # (O, BT)
        # TODO(synk): PyTorch casts to float64 before the final sigmoid; f64 is
        # software-emulated on TPU, so the sigmoid is computed in float32 here.
        o_ref[...] = jax.nn.sigmoid(y).astype(o_ref.dtype)

    return kernel


# ----------------------------- weight packing ---------------------------------


def _pack_weights(params, K, cin0, C):
    """Packs all weights/biases into one (rows, C) f32 slab, 8-aligned offsets."""
    pieces = []
    meta = []

    def add(a):
        a = jnp.asarray(a, jnp.float32)
        off = sum(int(p.shape[0]) for p in pieces)
        r, c = a.shape
        pieces.append(jnp.pad(a, ((0, (-r) % 8), (0, C - c))))
        return off

    def add_conv(w):  # (K, cin, cout) -> K stacked (C, C) tap matrices
        taps = [jnp.pad(w[j], ((0, C - w.shape[1]), (0, C - w.shape[2])))
                for j in range(K)]
        return add(jnp.concatenate(taps, axis=0))

    for i, blk in enumerate(params["blocks"]):
        m = {"dilation": 2 ** i, "has_down": "wd" in blk}
        m["w1"] = add_conv(blk["w1"])
        m["b1"] = add(blk["b1"])
        m["w2"] = add_conv(blk["w2"])
        m["b2"] = add(blk["b2"])
        if m["has_down"]:
            wd = blk["wd"][0]                                     # (cin, cout)
            m["wd"] = add(jnp.pad(wd, ((0, C - wd.shape[0]),
                                       (0, C - wd.shape[1]))))
            m["bd"] = add(blk["bd"])
        meta.append(m)

    lin_w_off = add(params["lin_w"].T)                            # (O, C_last)
    lin_b_off = add(params["lin_b"].T)                            # (O, 1)
    slab = jnp.concatenate(pieces, axis=0)
    return slab, meta, lin_w_off, lin_b_off


# ----------------------------- wrapper ----------------------------------------


def tcn_forward(x, params, kernel_size):
    """x: (B, T, input_size) float32 -> sigmoid(linear(TCN(x))) : (B, T, out)."""
    B, T, cin0 = x.shape
    K = kernel_size
    channels = [blk["w1"].shape[-1] for blk in params["blocks"]]
    out_size = params["lin_w"].shape[-1]

    # Uniform lane-padded channel width.
    C = max([cin0] + channels)
    C = (C + 7) // 8 * 8

    slab, meta, lin_w_off, lin_b_off = _pack_weights(params, K, cin0, C)

    BT = B * T
    x2d = jnp.pad(x, ((0, 0), (0, 0), (0, C - cin0))).reshape(BT, C)

    kernel = _build_kernel(meta, lin_w_off, lin_b_off, B=B, T=T, K=K, C=C,
                           O=out_size)

    y = pl.pallas_call(
        kernel,
        out_shape=jax.ShapeDtypeStruct((out_size, BT), jnp.float32),
        grid=(1,),
        in_specs=[
            pl.BlockSpec((BT, C), lambda i: (0, 0)),
            pl.BlockSpec(slab.shape, lambda i: (0, 0)),
        ],
        out_specs=pl.BlockSpec((out_size, BT), lambda i: (0, 0)),
        compiler_params=pltpu.CompilerParams(
            dimension_semantics=("arbitrary",)),
    )(x2d, slab)

    return y.T.reshape(B, T, out_size)


# ----------------------------- params & reference -----------------------------


def init_params(key, input_size, num_channels, kernel_size, output_size):
    params = {"blocks": []}
    for i, out_ch in enumerate(num_channels):
        in_ch = input_size if i == 0 else num_channels[i - 1]
        key, k1, k2, k3, k4, k5, k6 = jax.random.split(key, 7)
        blk = {
            "w1": jax.random.normal(k1, (kernel_size, in_ch, out_ch), jnp.float32) * 0.01,
            "b1": jax.random.normal(k2, (1, out_ch), jnp.float32) * 0.01,
            "w2": jax.random.normal(k3, (kernel_size, out_ch, out_ch), jnp.float32) * 0.01,
            "b2": jax.random.normal(k4, (1, out_ch), jnp.float32) * 0.01,
        }
        if in_ch != out_ch:
            blk["wd"] = jax.random.normal(k5, (1, in_ch, out_ch), jnp.float32) * 0.01
            blk["bd"] = jax.random.normal(k6, (1, out_ch), jnp.float32) * 0.01
        params["blocks"].append(blk)
    key, kw, kb = jax.random.split(key, 3)
    params["lin_w"] = jax.random.normal(kw, (num_channels[-1], output_size), jnp.float32) * 0.01
    params["lin_b"] = jax.random.normal(kb, (1, output_size), jnp.float32) * 0.01
    return params


def _reference_forward(x, params):
    """Pure-JAX (XLA) reference of the same math, for a correctness check."""
    hi = jax.lax.Precision.HIGHEST

    def conv(h, w, b, d):
        K = w.shape[0]
        T = h.shape[1]
        pad = d * (K - 1)
        hp = jnp.pad(h, ((0, 0), (pad, 0), (0, 0)))
        y = sum(jnp.einsum("btc,co->bto", hp[:, j * d:j * d + T, :], w[j],
                           precision=hi) for j in range(K))
        return y + b

    h = x
    for i, blk in enumerate(params["blocks"]):
        d = 2 ** i
        out = jax.nn.relu(conv(h, blk["w1"], blk["b1"], d))
        out = jax.nn.relu(conv(out, blk["w2"], blk["b2"], d))
        res = conv(h, blk["wd"], blk["bd"], 1) if "wd" in blk else h
        h = jax.nn.relu(out + res)
    y = jnp.einsum("btc,co->bto", h, params["lin_w"],
                   precision=hi) + params["lin_b"]
    return jax.nn.sigmoid(y)


if __name__ == "__main__":
    B, T = 2, 16
    INPUT_SIZE = 23       # from the reference script
    OUTPUT_SIZE = 1
    KERNEL_SIZE = 4       # args_kernel_size
    NUM_CHANNELS = [32, 32]

    key = jax.random.PRNGKey(0)
    kx, kp = jax.random.split(key)
    x = jax.random.normal(kx, (B, T, INPUT_SIZE), dtype=jnp.float32)
    params = init_params(kp, INPUT_SIZE, NUM_CHANNELS, KERNEL_SIZE, OUTPUT_SIZE)

    out = tcn_forward(x, params, KERNEL_SIZE)
    out = jax.block_until_ready(out)
    assert out.shape == (B, T, OUTPUT_SIZE), out.shape
    assert out.dtype == jnp.float32, out.dtype

    ref = _reference_forward(x, params)
    max_err = float(jnp.max(jnp.abs(out - ref)))
    assert jnp.allclose(out, ref, atol=1e-3, rtol=1e-3), max_err

    print("KERNEL_OK")
</pallas_src>

<mosaic_0001>
module attributes {stable_mosaic.version = 11 : i64} {
  func.func @kernel(%arg0: i32, %arg1: memref<32x32xf32, #tpu.memory_space<vmem>>, %arg2: memref<600x32xf32, #tpu.memory_space<vmem>>, %arg3: memref<1x32xf32, #tpu.memory_space<vmem>>) attributes {dimension_semantics = [#tpu.dimension_semantics<arbitrary>], iteration_bounds = array<i64: 1>, scalar_prefetch = 0 : i64, scratch_operands = 0 : i64, tpu.core_type = #tpu.core_type<tc>, window_params = [{pipeline_mode = #tpu.pipeline_mode<synchronous>, transform_indices = @transform_0, window_bounds = array<i64: 32, 32>}, {pipeline_mode = #tpu.pipeline_mode<synchronous>, transform_indices = @transform_1, window_bounds = array<i64: 600, 32>}, {pipeline_mode = #tpu.pipeline_mode<synchronous>, transform_indices = @transform_2, window_bounds = array<i64: 1, 32>}]} {
    %c0 = arith.constant 0 : index
    %c0_0 = arith.constant 0 : index
    %0 = vector.load %arg1[%c0, %c0_0] : memref<32x32xf32, #tpu.memory_space<vmem>>, vector<32x32xf32>
    %1 = tpu.iota {dimensions = array<i32: 0>} : vector<32x32xi32>
    %c16_i32 = arith.constant 16 : i32
    %c0_i32 = arith.constant 0 : i32
    %2 = arith.cmpi eq, %c16_i32, %c0_i32 : i32
    %c1_i32 = arith.constant 1 : i32
    %3 = arith.select %2, %c1_i32, %c16_i32 : i32
    %4 = vector.broadcast %3 : i32 to vector<32x32xi32>
    %5 = arith.remsi %1, %4 : vector<32x32xi32>
    %c0_i32_1 = arith.constant 0 : i32
    %6 = vector.broadcast %c0_i32_1 : i32 to vector<32x32xi32>
    %7 = arith.cmpi ne, %5, %6 : vector<32x32xi32>
    %c0_i32_2 = arith.constant 0 : i32
    %8 = vector.broadcast %c0_i32_2 : i32 to vector<32x32xi32>
    %9 = arith.cmpi slt, %5, %8 : vector<32x32xi32>
    %c0_i32_3 = arith.constant 0 : i32
    %10 = arith.cmpi slt, %3, %c0_i32_3 : i32
    %11 = vector.broadcast %10 : i1 to vector<32x32xi1>
    %12 = vector.broadcast %11 : vector<32x32xi1> to vector<32x32xi1>
    %13 = arith.xori %9, %12 : vector<32x32xi1>
    %14 = arith.andi %13, %7 : vector<32x32xi1>
    %15 = vector.broadcast %3 : i32 to vector<32x32xi32>
    %16 = arith.addi %5, %15 : vector<32x32xi32>
    %17 = arith.select %14, %16, %5 : vector<32x32xi1>, vector<32x32xi32>
    %c128 = arith.constant 128 : index
    %c0_4 = arith.constant 0 : index
    %18 = vector.load %arg2[%c128, %c0_4] : memref<600x32xf32, #tpu.memory_space<vmem>>, vector<1x32xf32>
    %c0_5 = arith.constant 0 : index
    %c0_6 = arith.constant 0 : index
    %19 = vector.load %arg2[%c0_5, %c0_6] : memref<600x32xf32, #tpu.memory_space<vmem>>, vector<32x32xf32>
    %c3_i32 = arith.constant 3 : i32
    %20 = vector.broadcast %c3_i32 : i32 to vector<32x32xi32>
    %21 = arith.cmpi sge, %17, %20 : vector<32x32xi32>
    %c3_i32_7 = arith.constant 3 : i32
    %22 = tpu.dynamic_rotate %0 by %c3_i32_7 dim 0 : vector<32x32xf32>, i32 -> vector<32x32xf32>
    %cst = arith.constant 0.000000e+00 : f32
    %23 = vector.broadcast %cst : f32 to vector<32x32xf32>
    %24 = arith.select %21, %22, %23 : vector<32x32xi1>, vector<32x32xf32>
    %cst_8 = arith.constant dense<0.000000e+00> : vector<32x32xf32>
    %25 = tpu.matmul %24, %19, %cst_8 {dimension_numbers = #tpu.dot_dimension_numbers<[1], [0], [0], [1], [0, 0, 1, 1], [], []>} : vector<32x32xf32>, vector<32x32xf32>, vector<32x32xf32> -> vector<32x32xf32>
    %26 = vector.broadcast %18 : vector<1x32xf32> to vector<32x32xf32>
    %27 = arith.addf %26, %25 : vector<32x32xf32>
    %c32 = arith.constant 32 : index
    %c0_9 = arith.constant 0 : index
    %28 = vector.load %arg2[%c32, %c0_9] : memref<600x32xf32, #tpu.memory_space<vmem>>, vector<32x32xf32>
    %c2_i32 = arith.constant 2 : i32
    %29 = vector.broadcast %c2_i32 : i32 to vector<32x32xi32>
    %30 = arith.cmpi sge, %17, %29 : vector<32x32xi32>
    %c2_i32_10 = arith.constant 2 : i32
    %31 = tpu.dynamic_rotate %0 by %c2_i32_10 dim 0 : vector<32x32xf32>, i32 -> vector<32x32xf32>
    %cst_11 = arith.constant 0.000000e+00 : f32
    %32 = vector.broadcast %cst_11 : f32 to vector<32x32xf32>
    %33 = arith.select %30, %31, %32 : vector<32x32xi1>, vector<32x32xf32>
    %cst_12 = arith.constant dense<0.000000e+00> : vector<32x32xf32>
    %34 = tpu.matmul %33, %28, %cst_12 {dimension_numbers = #tpu.dot_dimension_numbers<[1], [0], [0], [1], [0, 0, 1, 1], [], []>} : vector<32x32xf32>, vector<32x32xf32>, vector<32x32xf32> -> vector<32x32xf32>
    %35 = arith.addf %27, %34 : vector<32x32xf32>
    %c64 = arith.constant 64 : index
    %c0_13 = arith.constant 0 : index
    %36 = vector.load %arg2[%c64, %c0_13] : memref<600x32xf32, #tpu.memory_space<vmem>>, vector<32x32xf32>
    %c1_i32_14 = arith.constant 1 : i32
    %37 = vector.broadcast %c1_i32_14 : i32 to vector<32x32xi32>
    %38 = arith.cmpi sge, %17, %37 : vector<32x32xi32>
    %c1_i32_15 = arith.constant 1 : i32
    %39 = tpu.dynamic_rotate %0 by %c1_i32_15 dim 0 : vector<32x32xf32>, i32 -> vector<32x32xf32>
    %cst_16 = arith.constant 0.000000e+00 : f32
    %40 = vector.broadcast %cst_16 : f32 to vector<32x32xf32>
    %41 = arith.select %38, %39, %40 : vector<32x32xi1>, vector<32x32xf32>
    %cst_17 = arith.constant dense<0.000000e+00> : vector<32x32xf32>
    %42 = tpu.matmul %41, %36, %cst_17 {dimension_numbers = #tpu.dot_dimension_numbers<[1], [0], [0], [1], [0, 0, 1, 1], [], []>} : vector<32x32xf32>, vector<32x32xf32>, vector<32x32xf32> -> vector<32x32xf32>
    %43 = arith.addf %35, %42 : vector<32x32xf32>
    %c96 = arith.constant 96 : index
    %c0_18 = arith.constant 0 : index
    %44 = vector.load %arg2[%c96, %c0_18] : memref<600x32xf32, #tpu.memory_space<vmem>>, vector<32x32xf32>
    %cst_19 = arith.constant dense<0.000000e+00> : vector<32x32xf32>
    %45 = tpu.matmul %0, %44, %cst_19 {dimension_numbers = #tpu.dot_dimension_numbers<[1], [0], [0], [1], [0, 0, 1, 1], [], []>} : vector<32x32xf32>, vector<32x32xf32>, vector<32x32xf32> -> vector<32x32xf32>
    %46 = arith.addf %43, %45 : vector<32x32xf32>
    %cst_20 = arith.constant 0.000000e+00 : f32
    %47 = vector.broadcast %cst_20 : f32 to vector<32x32xf32>
    %48 = arith.maximumf %46, %47 : vector<32x32xf32>
    %c264 = arith.constant 264 : index
    %c0_21 = arith.constant 0 : index
    %49 = vector.load %arg2[%c264, %c0_21] : memref<600x32xf32, #tpu.memory_space<vmem>>, vector<1x32xf32>
    %c136 = arith.constant 136 : index
    %c0_22 = arith.constant 0 : index
    %50 = vector.load %arg2[%c136, %c0_22] : memref<600x32xf32, #tpu.memory_space<vmem>>, vector<32x32xf32>
    %c3_i32_23 = arith.constant 3 : i32
    %51 = vector.broadcast %c3_i32_23 : i32 to vector<32x32xi32>
    %52 = arith.cmpi sge, %17, %51 : vector<32x32xi32>
    %c3_i32_24 = arith.constant 3 : i32
    %53 = tpu.dynamic_rotate %48 by %c3_i32_24 dim 0 : vector<32x32xf32>, i32 -> vector<32x32xf32>
    %cst_25 = arith.constant 0.000000e+00 : f32
    %54 = vector.broadcast %cst_25 : f32 to vector<32x32xf32>
    %55 = arith.select %52, %53, %54 : vector<32x32xi1>, vector<32x32xf32>
    %cst_26 = arith.constant dense<0.000000e+00> : vector<32x32xf32>
    %56 = tpu.matmul %55, %50, %cst_26 {dimension_numbers = #tpu.dot_dimension_numbers<[1], [0], [0], [1], [0, 0, 1, 1], [], []>} : vector<32x32xf32>, vector<32x32xf32>, vector<32x32xf32> -> vector<32x32xf32>
    %57 = vector.broadcast %49 : vector<1x32xf32> to vector<32x32xf32>
    %58 = arith.addf %57, %56 : vector<32x32xf32>
    %c168 = arith.constant 168 : index
    %c0_27 = arith.constant 0 : index
    %59 = vector.load %arg2[%c168, %c0_27] : memref<600x32xf32, #tpu.memory_space<vmem>>, vector<32x32xf32>
    %c2_i32_28 = arith.constant 2 : i32
    %60 = vector.broadcast %c2_i32_28 : i32 to vector<32x32xi32>
    %61 = arith.cmpi sge, %17, %60 : vector<32x32xi32>
    %c2_i32_29 = arith.constant 2 : i32
    %62 = tpu.dynamic_rotate %48 by %c2_i32_29 dim 0 : vector<32x32xf32>, i32 -> vector<32x32xf32>
    %cst_30 = arith.constant 0.000000e+00 : f32
    %63 = vector.broadcast %cst_30 : f32 to vector<32x32xf32>
    %64 = arith.select %61, %62, %63 : vector<32x32xi1>, vector<32x32xf32>
    %cst_31 = arith.constant dense<0.000000e+00> : vector<32x32xf32>
    %65 = tpu.matmul %64, %59, %cst_31 {dimension_numbers = #tpu.dot_dimension_numbers<[1], [0], [0], [1], [0, 0, 1, 1], [], []>} : vector<32x32xf32>, vector<32x32xf32>, vector<32x32xf32> -> vector<32x32xf32>
    %66 = arith.addf %58, %65 : vector<32x32xf32>
    %c200 = arith.constant 200 : index
    %c0_32 = arith.constant 0 : index
    %67 = vector.load %arg2[%c200, %c0_32] : memref<600x32xf32, #tpu.memory_space<vmem>>, vector<32x32xf32>
    %c1_i32_33 = arith.constant 1 : i32
    %68 = vector.broadcast %c1_i32_33 : i32 to vector<32x32xi32>
    %69 = arith.cmpi sge, %17, %68 : vector<32x32xi32>
    %c1_i32_34 = arith.constant 1 : i32
    %70 = tpu.dynamic_rotate %48 by %c1_i32_34 dim 0 : vector<32x32xf32>, i32 -> vector<32x32xf32>
    %cst_35 = arith.constant 0.000000e+00 : f32
    %71 = vector.broadcast %cst_35 : f32 to vector<32x32xf32>
    %72 = arith.select %69, %70, %71 : vector<32x32xi1>, vector<32x32xf32>
    %cst_36 = arith.constant dense<0.000000e+00> : vector<32x32xf32>
    %73 = tpu.matmul %72, %67, %cst_36 {dimension_numbers = #tpu.dot_dimension_numbers<[1], [0], [0], [1], [0, 0, 1, 1], [], []>} : vector<32x32xf32>, vector<32x32xf32>, vector<32x32xf32> -> vector<32x32xf32>
    %74 = arith.addf %66, %73 : vector<32x32xf32>
    %c232 = arith.constant 232 : index
    %c0_37 = arith.constant 0 : index
    %75 = vector.load %arg2[%c232, %c0_37] : memref<600x32xf32, #tpu.memory_space<vmem>>, vector<32x32xf32>
    %cst_38 = arith.constant dense<0.000000e+00> : vector<32x32xf32>
    %76 = tpu.matmul %48, %75, %cst_38 {dimension_numbers = #tpu.dot_dimension_numbers<[1], [0], [0], [1], [0, 0, 1, 1], [], []>} : vector<32x32xf32>, vector<32x32xf32>, vector<32x32xf32> -> vector<32x32xf32>
    %77 = arith.addf %74, %76 : vector<32x32xf32>
    %cst_39 = arith.constant 0.000000e+00 : f32
    %78 = vector.broadcast %cst_39 : f32 to vector<32x32xf32>
    %79 = arith.maximumf %77, %78 : vector<32x32xf32>
    %c272 = arith.constant 272 : index
    %c0_40 = arith.constant 0 : index
    %80 = vector.load %arg2[%c272, %c0_40] : memref<600x32xf32, #tpu.memory_space<vmem>>, vector<32x32xf32>
    %c304 = arith.constant 304 : index
    %c0_41 = arith.constant 0 : index
    %81 = vector.load %arg2[%c304, %c0_41] : memref<600x32xf32, #tpu.memory_space<vmem>>, vector<1x32xf32>
    %cst_42 = arith.constant dense<0.000000e+00> : vector<32x32xf32>
    %82 = tpu.matmul %0, %80, %cst_42 {dimension_numbers = #tpu.dot_dimension_numbers<[1], [0], [0], [1], [0, 0, 1, 1], [], []>} : vector<32x32xf32>, vector<32x32xf32>, vector<32x32xf32> -> vector<32x32xf32>
    %83 = vector.broadcast %81 : vector<1x32xf32> to vector<32x32xf32>
    %84 = arith.addf %82, %83 : vector<32x32xf32>
    %85 = arith.addf %79, %84 : vector<32x32xf32>
    %cst_43 = arith.constant 0.000000e+00 : f32
    %86 = vector.broadcast %cst_43 : f32 to vector<32x32xf32>
    %87 = arith.maximumf %85, %86 : vector<32x32xf32>
    %c440 = arith.constant 440 : index
    %c0_44 = arith.constant 0 : index
    %88 = vector.load %arg2[%c440, %c0_44] : memref<600x32xf32, #tpu.memory_space<vmem>>, vector<1x32xf32>
    %c312 = arith.constant 312 : index
    %c0_45 = arith.constant 0 : index
    %89 = vector.load %arg2[%c312, %c0_45] : memref<600x32xf32, #tpu.memory_space<vmem>>, vector<32x32xf32>
    %c6_i32 = arith.constant 6 : i32
    %90 = vector.broadcast %c6_i32 : i32 to vector<32x32xi32>
    %91 = arith.cmpi sge, %17, %90 : vector<32x32xi32>
    %c6_i32_46 = arith.constant 6 : i32
    %92 = tpu.dynamic_rotate %87 by %c6_i32_46 dim 0 : vector<32x32xf32>, i32 -> vector<32x32xf32>
    %cst_47 = arith.constant 0.000000e+00 : f32
    %93 = vector.broadcast %cst_47 : f32 to vector<32x32xf32>
    %94 = arith.select %91, %92, %93 : vector<32x32xi1>, vector<32x32xf32>
    %cst_48 = arith.constant dense<0.000000e+00> : vector<32x32xf32>
    %95 = tpu.matmul %94, %89, %cst_48 {dimension_numbers = #tpu.dot_dimension_numbers<[1], [0], [0], [1], [0, 0, 1, 1], [], []>} : vector<32x32xf32>, vector<32x32xf32>, vector<32x32xf32> -> vector<32x32xf32>
    %96 = vector.broadcast %88 : vector<1x32xf32> to vector<32x32xf32>
    %97 = arith.addf %96, %95 : vector<32x32xf32>
    %c344 = arith.constant 344 : index
    %c0_49 = arith.constant 0 : index
    %98 = vector.load %arg2[%c344, %c0_49] : memref<600x32xf32, #tpu.memory_space<vmem>>, vector<32x32xf32>
    %c4_i32 = arith.constant 4 : i32
    %99 = vector.broadcast %c4_i32 : i32 to vector<32x32xi32>
    %100 = arith.cmpi sge, %17, %99 : vector<32x32xi32>
    %c4_i32_50 = arith.constant 4 : i32
    %101 = tpu.dynamic_rotate %87 by %c4_i32_50 dim 0 : vector<32x32xf32>, i32 -> vector<32x32xf32>
    %cst_51 = arith.constant 0.000000e+00 : f32
    %102 = vector.broadcast %cst_51 : f32 to vector<32x32xf32>
    %103 = arith.select %100, %101, %102 : vector<32x32xi1>, vector<32x32xf32>
    %cst_52 = arith.constant dense<0.000000e+00> : vector<32x32xf32>
    %104 = tpu.matmul %103, %98, %cst_52 {dimension_numbers = #tpu.dot_dimension_numbers<[1], [0], [0], [1], [0, 0, 1, 1], [], []>} : vector<32x32xf32>, vector<32x32xf32>, vector<32x32xf32> -> vector<32x32xf32>
    %105 = arith.addf %97, %104 : vector<32x32xf32>
    %c376 = arith.constant 376 : index
    %c0_53 = arith.constant 0 : index
    %106 = vector.load %arg2[%c376, %c0_53] : memref<600x32xf32, #tpu.memory_space<vmem>>, vector<32x32xf32>
    %c2_i32_54 = arith.constant 2 : i32
    %107 = vector.broadcast %c2_i32_54 : i32 to vector<32x32xi32>
    %108 = arith.cmpi sge, %17, %107 : vector<32x32xi32>
    %c2_i32_55 = arith.constant 2 : i32
    %109 = tpu.dynamic_rotate %87 by %c2_i32_55 dim 0 : vector<32x32xf32>, i32 -> vector<32x32xf32>
    %cst_56 = arith.constant 0.000000e+00 : f32
    %110 = vector.broadcast %cst_56 : f32 to vector<32x32xf32>
    %111 = arith.select %108, %109, %110 : vector<32x32xi1>, vector<32x32xf32>
    %cst_57 = arith.constant dense<0.000000e+00> : vector<32x32xf32>
    %112 = tpu.matmul %111, %106, %cst_57 {dimension_numbers = #tpu.dot_dimension_numbers<[1], [0], [0], [1], [0, 0, 1, 1], [], []>} : vector<32x32xf32>, vector<32x32xf32>, vector<32x32xf32> -> vector<32x32xf32>
    %113 = arith.addf %105, %112 : vector<32x32xf32>
    %c408 = arith.constant 408 : index
    %c0_58 = arith.constant 0 : index
    %114 = vector.load %arg2[%c408, %c0_58] : memref<600x32xf32, #tpu.memory_space<vmem>>, vector<32x32xf32>
    %cst_59 = arith.constant dense<0.000000e+00> : vector<32x32xf32>
    %115 = tpu.matmul %87, %114, %cst_59 {dimension_numbers = #tpu.dot_dimension_numbers<[1], [0], [0], [1], [0, 0, 1, 1], [], []>} : vector<32x32xf32>, vector<32x32xf32>, vector<32x32xf32> -> vector<32x32xf32>
    %116 = arith.addf %113, %115 : vector<32x32xf32>
    %cst_60 = arith.constant 0.000000e+00 : f32
    %117 = vector.broadcast %cst_60 : f32 to vector<32x32xf32>
    %118 = arith.maximumf %116, %117 : vector<32x32xf32>
    %c576 = arith.constant 576 : index
    %c0_61 = arith.constant 0 : index
    %119 = vector.load %arg2[%c576, %c0_61] : memref<600x32xf32, #tpu.memory_space<vmem>>, vector<1x32xf32>
    %c448 = arith.constant 448 : index
    %c0_62 = arith.constant 0 : index
    %120 = vector.load %arg2[%c448, %c0_62] : memref<600x32xf32, #tpu.memory_space<vmem>>, vector<32x32xf32>
    %c6_i32_63 = arith.constant 6 : i32
    %121 = vector.broadcast %c6_i32_63 : i32 to vector<32x32xi32>
    %122 = arith.cmpi sge, %17, %121 : vector<32x32xi32>
    %c6_i32_64 = arith.constant 6 : i32
    %123 = tpu.dynamic_rotate %118 by %c6_i32_64 dim 0 : vector<32x32xf32>, i32 -> vector<32x32xf32>
    %cst_65 = arith.constant 0.000000e+00 : f32
    %124 = vector.broadcast %cst_65 : f32 to vector<32x32xf32>
    %125 = arith.select %122, %123, %124 : vector<32x32xi1>, vector<32x32xf32>
    %cst_66 = arith.constant dense<0.000000e+00> : vector<32x32xf32>
    %126 = tpu.matmul %125, %120, %cst_66 {dimension_numbers = #tpu.dot_dimension_numbers<[1], [0], [0], [1], [0, 0, 1, 1], [], []>} : vector<32x32xf32>, vector<32x32xf32>, vector<32x32xf32> -> vector<32x32xf32>
    %127 = vector.broadcast %119 : vector<1x32xf32> to vector<32x32xf32>
    %128 = arith.addf %127, %126 : vector<32x32xf32>
    %c480 = arith.constant 480 : index
    %c0_67 = arith.constant 0 : index
    %129 = vector.load %arg2[%c480, %c0_67] : memref<600x32xf32, #tpu.memory_space<vmem>>, vector<32x32xf32>
    %c4_i32_68 = arith.constant 4 : i32
    %130 = vector.broadcast %c4_i32_68 : i32 to vector<32x32xi32>
    %131 = arith.cmpi sge, %17, %130 : vector<32x32xi32>
    %c4_i32_69 = arith.constant 4 : i32
    %132 = tpu.dynamic_rotate %118 by %c4_i32_69 dim 0 : vector<32x32xf32>, i32 -> vector<32x32xf32>
    %cst_70 = arith.constant 0.000000e+00 : f32
    %133 = vector.broadcast %cst_70 : f32 to vector<32x32xf32>
    %134 = arith.select %131, %132, %133 : vector<32x32xi1>, vector<32x32xf32>
    %cst_71 = arith.constant dense<0.000000e+00> : vector<32x32xf32>
    %135 = tpu.matmul %134, %129, %cst_71 {dimension_numbers = #tpu.dot_dimension_numbers<[1], [0], [0], [1], [0, 0, 1, 1], [], []>} : vector<32x32xf32>, vector<32x32xf32>, vector<32x32xf32> -> vector<32x32xf32>
    %136 = arith.addf %128, %135 : vector<32x32xf32>
    %c512 = arith.constant 512 : index
    %c0_72 = arith.constant 0 : index
    %137 = vector.load %arg2[%c512, %c0_72] : memref<600x32xf32, #tpu.memory_space<vmem>>, vector<32x32xf32>
    %c2_i32_73 = arith.constant 2 : i32
    %138 = vector.broadcast %c2_i32_73 : i32 to vector<32x32xi32>
    %139 = arith.cmpi sge, %17, %138 : vector<32x32xi32>
    %c2_i32_74 = arith.constant 2 : i32
    %140 = tpu.dynamic_rotate %118 by %c2_i32_74 dim 0 : vector<32x32xf32>, i32 -> vector<32x32xf32>
    %cst_75 = arith.constant 0.000000e+00 : f32
    %141 = vector.broadcast %cst_75 : f32 to vector<32x32xf32>
    %142 = arith.select %139, %140, %141 : vector<32x32xi1>, vector<32x32xf32>
    %cst_76 = arith.constant dense<0.000000e+00> : vector<32x32xf32>
    %143 = tpu.matmul %142, %137, %cst_76 {dimension_numbers = #tpu.dot_dimension_numbers<[1], [0], [0], [1], [0, 0, 1, 1], [], []>} : vector<32x32xf32>, vector<32x32xf32>, vector<32x32xf32> -> vector<32x32xf32>
    %144 = arith.addf %136, %143 : vector<32x32xf32>
    %c544 = arith.constant 544 : index
    %c0_77 = arith.constant 0 : index
    %145 = vector.load %arg2[%c544, %c0_77] : memref<600x32xf32, #tpu.memory_space<vmem>>, vector<32x32xf32>
    %cst_78 = arith.constant dense<0.000000e+00> : vector<32x32xf32>
    %146 = tpu.matmul %118, %145, %cst_78 {dimension_numbers = #tpu.dot_dimension_numbers<[1], [0], [0], [1], [0, 0, 1, 1], [], []>} : vector<32x32xf32>, vector<32x32xf32>, vector<32x32xf32> -> vector<32x32xf32>
    %147 = arith.addf %144, %146 : vector<32x32xf32>
    %cst_79 = arith.constant 0.000000e+00 : f32
    %148 = vector.broadcast %cst_79 : f32 to vector<32x32xf32>
    %149 = arith.maximumf %147, %148 : vector<32x32xf32>
    %150 = arith.addf %149, %87 : vector<32x32xf32>
    %cst_80 = arith.constant 0.000000e+00 : f32
    %151 = vector.broadcast %cst_80 : f32 to vector<32x32xf32>
    %152 = arith.maximumf %150, %151 : vector<32x32xf32>
    %c584 = arith.constant 584 : index
    %c0_81 = arith.constant 0 : index
    %153 = vector.load %arg2[%c584, %c0_81] : memref<600x32xf32, #tpu.memory_space<vmem>>, vector<1x32xf32>
    %c592 = arith.constant 592 : index
    %c0_82 = arith.constant 0 : index
    %154 = vector.load %arg2[%c592, %c0_82] : memref<600x32xf32, #tpu.memory_space<vmem>>, vector<1x1xf32>
    %155 = tpu.transpose %152, [1, 0] : vector<32x32xf32> -> vector<32x32xf32>
    %cst_83 = arith.constant dense<0.000000e+00> : vector<1x32xf32>
    %156 = tpu.matmul %153, %155, %cst_83 {dimension_numbers = #tpu.dot_dimension_numbers<[1], [0], [0], [1], [0, 0, 1, 1], [], []>} : vector<1x32xf32>, vector<32x32xf32>, vector<1x32xf32> -> vector<1x32xf32>
    %157 = vector.broadcast %154 : vector<1x1xf32> to vector<1x32xf32>
    %158 = arith.addf %156, %157 : vector<1x32xf32>
    %159 = arith.negf %158 : vector<1x32xf32>
    %160 = math.exp %159 : vector<1x32xf32>
    %cst_84 = arith.constant 1.000000e+00 : f32
    %161 = vector.broadcast %cst_84 : f32 to vector<1x32xf32>
    %162 = arith.addf %161, %160 : vector<1x32xf32>
    %163 = arith.divf %161, %162 : vector<1x32xf32>
    %c0_85 = arith.constant 0 : index
    %c0_86 = arith.constant 0 : index
    %164 = vector.load %arg3[%c0_85, %c0_86] : memref<1x32xf32, #tpu.memory_space<vmem>>, vector<1x32xf32>
    tpu.vector_store %arg3[%c0_85, %c0_86], %163 {strides = array<i32>} : memref<1x32xf32, #tpu.memory_space<vmem>>, vector<1x32xf32>,
    return
  }
  func.func @transform_0(%arg0: i32) -> (i32, i32) {
    %c0_i32 = arith.constant 0 : i32
    %c0_i32_0 = arith.constant 0 : i32
    %c0_i32_1 = arith.constant 0 : i32
    return %c0_i32, %c0_i32_0 : i32, i32
  }
  func.func @transform_1(%arg0: i32) -> (i32, i32) {
    %c0_i32 = arith.constant 0 : i32
    %c0_i32_0 = arith.constant 0 : i32
    %c0_i32_1 = arith.constant 0 : i32
    return %c0_i32, %c0_i32_0 : i32, i32
  }
  func.func @transform_2(%arg0: i32) -> (i32, i32) {
    %c0_i32 = arith.constant 0 : i32
    %c0_i32_0 = arith.constant 0 : i32
    %c0_i32_1 = arith.constant 0 : i32
    return %c0_i32, %c0_i32_0 : i32, i32
  }
}

</mosaic_0001>

<llo_original>
// kernel: tpu_custom_call.1
$region0: #{tpu_custom_call.1}
  #allocation0 [shape = 'u32[]', space=smem, size = 0x4, offset = 0x4, fixed_abs, tag = 'smem constant byte address 0x4 - core index']
  #allocation1 [shape = 'u32[144,128]{1,0:T(1,128)}', space=vmem, size = 0x12000, scoped, tag = 'internal scratch']
  %s0 = inlined_call_operand.vmem [shape: f32[32,32], index: 0, kind: input, shape index: {}]
  %s1 = inlined_call_operand.vmem [shape: f32[600,32], index: 1, kind: input, shape index: {}]
  %s2 = inlined_call_operand.hbm [shape: f32[1,32], index: 2, kind: output, shape index: {}]
  %s3 = sld [smem:[#allocation0]]
  $region18: #{tpu_custom_call.1} parent=0
    _
  %s5 = ssub.s32 1, %s3
  %s6 = scalar_select 0, %s5, %s3
  $region1: #{tpu_custom_call.1} parent=0
    #allocation2 [shape = 'u8[512]{0}', space=vmem, size = 0x400, scoped, tag = 'output window, operand 0, single buffered']
    #allocation3 [shape = 's32[1]{0}', space=sflag, size = 0x4, scoped, tag = 'scoped memory for tpu_custom_call.1']
    %7 = vsyncpa [#allocation3], 0
    // Predicated region
    $region2: #{tpu_custom_call.1} parent=1 // pred_check
      _
    $region3: #{tpu_custom_call.1} parent=1 // pred_check_branch
      %9 = sbr.rel (0) target = $region5
    $region4: #{tpu_custom_call.1} parent=1 // pred_region
      _
    $region5: #{tpu_custom_call.1} parent=1 // pred_fallthru
      _
    // Predicated region
    $region6: #{tpu_custom_call.1} parent=1 // pred_check
      _
    $region7: #{tpu_custom_call.1} parent=1 // pred_check_branch
      %11 = sbr.rel (0) target = $region9
    $region8: #{tpu_custom_call.1} parent=1 // pred_region
      _
    $region9: #{tpu_custom_call.1} parent=1 // pred_fallthru
      _
    %v12 = vld [vmem:[%s0] sm:$0xff]
    %v13 = vld [vmem:[%s0 + $0x8] sm:$0xff]
    %v14 = vld [vmem:[%s0 + $0x10] sm:$0xff]
    %v15 = vld [vmem:[%s0 + $0x18] sm:$0xff]
    %v16 = vlaneseq
    %v17 = vshrl.u32 %v16, 7
    %v18 = vadd.s32 %v17, 8
    %v19 = vadd.s32 %v17, 16
    %v20 = vadd.s32 %v17, 24
    %vm21 = vcmp.lt.s32.totalorder %v17, 0
    %v22 = vsub.s32 0, %v17
    %v23 = vsel %vm21, %v22, %v17
    %v24 = vshrl.u32 %v23, 4
    %v25 = vand.u32 %v23, 15
    %v26 = vsub.s32 0, %v25
    %v27 = vsel %vm21, %v26, %v25
    %vm28 = vcmp.lt.s32.totalorder %v18, 0
    %v29 = vsub.s32 0, %v18
    %v30 = vsel %vm28, %v29, %v18
    %v31 = vshrl.u32 %v30, 4
    %v32 = vand.u32 %v30, 15
    %v33 = vsub.s32 0, %v32
    %v34 = vsel %vm28, %v33, %v32
    %vm35 = vcmp.lt.s32.totalorder %v19, 0
    %v36 = vsub.s32 0, %v19
    %v37 = vsel %vm35, %v36, %v19
    %v38 = vshrl.u32 %v37, 4
    %v39 = vand.u32 %v37, 15
    %v40 = vsub.s32 0, %v39
    %v41 = vsel %vm35, %v40, %v39
    %vm42 = vcmp.lt.s32.totalorder %v20, 0
    %v43 = vsub.s32 0, %v20
    %v44 = vsel %vm42, %v43, %v20
    %v45 = vshrl.u32 %v44, 4
    %v46 = vand.u32 %v44, 15
    %v47 = vsub.s32 0, %v46
    %v48 = vsel %vm42, %v47, %v46
    %vm49 = vcmp.ne.s32.totalorder %v27, 0
    %vm50 = vcmp.ne.s32.totalorder %v34, 0
    %vm51 = vcmp.ne.s32.totalorder %v41, 0
    %vm52 = vcmp.ne.s32.totalorder %v48, 0
    %vm53 = vcmp.lt.s32.totalorder %v27, 0
    %vm54 = vcmp.lt.s32.totalorder %v34, 0
    %vm55 = vcmp.lt.s32.totalorder %v41, 0
    %vm56 = vcmp.lt.s32.totalorder %v48, 0
    %vm57 = vmand %vm53, %vm49
    %vm58 = vmand %vm54, %vm50
    %vm59 = vmand %vm55, %vm51
    %vm60 = vmand %vm56, %vm52
    %v61 = vadd.s32 %v27, 16
    %v62 = vadd.s32 %v34, 16
    %v63 = vadd.s32 %v41, 16
    %v64 = vadd.s32 %v48, 16
    %v65 = vsel %vm57, %v61, %v27
    %v66 = vsel %vm58, %v62, %v34
    %v67 = vsel %vm59, %v63, %v41
    %v68 = vsel %vm60, %v64, %v48
    %v69 = vld [vmem:[%s1 + $0x80] sm:$0x1]
    %v70 = vld [vmem:[%s1] sm:$0xff]
    %v71 = vld [vmem:[%s1 + $0x8] sm:$0xff]
    %v72 = vld [vmem:[%s1 + $0x10] sm:$0xff]
    %v73 = vld [vmem:[%s1 + $0x18] sm:$0xff]
    %vm74 = vcmp.ge.s32.totalorder %v65, 3
    %vm75 = vcmp.ge.s32.totalorder %v66, 3
    %vm76 = vcmp.ge.s32.totalorder %v67, 3
    %vm77 = vcmp.ge.s32.totalorder %v68, 3
    %v78 = vrot.slane %v12, 5
    %v79 = vrot.slane %v13, 5
    %v80 = vrot.slane %v14, 5
    %v81 = vrot.slane %v15, 5
    %vm82 = vcmp.lt.s32.totalorder %v17, 3
    %v83 = vsel %vm82, %v80, %v81
    %v84 = vsel %vm82, %v79, %v80
    %v85 = vsel %vm82, %v78, %v79
    %v86 = vsel %vm82, %v81, %v78
    %v87 = vsel %vm74, %v86, 0.0
    %v88 = vsel %vm75, %v85, 0.0
    %v89 = vsel %vm76, %v84, 0.0
    %v90 = vsel %vm77, %v83, 0.0
    %vm91 = vcmask 261120
    %v93 = vsel %vm91, %v87, 0
    %v96 = vsel %vm91, %v88, 0
    %v99 = vsel %vm91, %v89, 0
    %v102 = vsel %vm91, %v90, 0
    %104 = vmatprep.subr.mxu0 0.0
    %105 = vmatpush1.msra.mxu0 %v70
    %106 = vmatprep.subr.mxu0 0.0
    %107 = vmatpush1.msra.mxu0 %v71
    %108 = vmatprep.subr.mxu0 0.0
    %109 = vmatpush1.msra.mxu0 %v72
    %110 = vmatprep.subr.mxu0 0.0
    %111 = vmatpush1.msra.mxu0 %v73
    %112 = vmatprep.subr.mxu0 0.0
    %113 = vmatpush1.msra.mxu0 0.0
    %114 = vmatprep.subr.mxu0 0.0
    %115 = vmatpush1.msra.mxu0 0.0
    %116 = vmatprep.subr.mxu0 0.0
    %117 = vmatpush1.msra.mxu0 0.0
    %118 = vmatprep.subr.mxu0 0.0
    %119 = vmatpush1.msra.mxu0 0.0
    %120 = vmatprep.subr.mxu0 0.0
    %121 = vmatpush1.msra.mxu0 0.0
    %122 = vmatprep.subr.mxu0 0.0
    %123 = vmatpush1.msra.mxu0 0.0
    %124 = vmatprep.subr.mxu0 0.0
    %125 = vmatpush1.msra.mxu0 0.0
    %126 = vmatprep.subr.mxu0 0.0
    %127 = vmatpush1.msra.mxu0 0.0
    %128 = vmatprep.subr.mxu0 0.0
    %129 = vmatpush1.msra.mxu0 0.0
    %130 = vmatprep.subr.mxu0 0.0
    %131 = vmatpush1.msra.mxu0 0.0
    %132 = vmatprep.subr.mxu0 0.0
    %133 = vmatpush1.msra.mxu0 0.0
    %134 = vmatprep.subr.mxu0 0.0
    %135 = vmatpush1.msra.mxu0 0.0
    %136 = vmatprep.subr.mxu0 0.0
    %137 = vmatpush1.msra.mxu0 0.0
    %138 = vmatprep.subr.mxu0 0.0
    %139 = vmatpush1.msra.mxu0 0.0
    %140 = vmatprep.subr.mxu0 0.0
    %141 = vmatpush1.msra.mxu0 0.0
    %142 = vmatprep.subr.mxu0 0.0
    %143 = vmatpush1.msra.mxu0 0.0
    %144 = vmatprep.subr.mxu0 0.0
    %145 = vmatpush1.msra.mxu0 0.0
    %146 = vmatprep.subr.mxu0 0.0
    %147 = vmatpush1.msra.mxu0 0.0
    %148 = vmatprep.subr.mxu0 0.0
    %149 = vmatpush1.msra.mxu0 0.0
    %150 = vmatprep.subr.mxu0 0.0
    %151 = vmatpush1.msra.mxu0 0.0
    %152 = vmatprep.subr.mxu0 0.0
    %153 = vmatpush1.msra.mxu0 0.0
    %154 = vmatprep.subr.mxu0 0.0
    %155 = vmatpush1.msra.mxu0 0.0
    %156 = vmatprep.subr.mxu0 0.0
    %157 = vmatpush1.msra.mxu0 0.0
    %158 = vmatprep.subr.mxu0 0.0
    %159 = vmatpush1.msra.mxu0 0.0
    %160 = vmatprep.subr.mxu0 0.0
    %161 = vmatpush1.msra.mxu0 0.0
    %162 = vmatprep.subr.mxu0 0.0
    %163 = vmatpush1.msra.mxu0 0.0
    %164 = vmatprep.subr.mxu0 0.0
    %165 = vmatpush1.msra.mxu0 0.0
    %166 = vmatprep.subr.mxu0 0.0
    %167 = vmatpush1.msra.mxu0 0.0
    %168 = vmatprep.mubr.f32.mxu0 0.0
    %169 = vmatmul.mubr.f32.gmra.mrb[0].mxu0 %v93
    %v170 = vpop.f32.mrb[0].mxu0
    %v171 = vadd.f32 0.0, %v170
    %v172 = vpop.f32.mrb[0].mxu0
    %173 = vmatprep.mubr.f32.mxu0 0.0
    %174 = vmatmul.mubr.f32.gmra.mrb[0].mxu0 %v96
    %v175 = vpop.f32.mrb[0].mxu0
    %v176 = vadd.f32 0.0, %v175
    %v177 = vpop.f32.mrb[0].mxu0
    %178 = vmatprep.mubr.f32.mxu0 0.0
    %179 = vmatmul.mubr.f32.gmra.mrb[0].mxu0 %v99
    %v180 = vpop.f32.mrb[0].mxu0
    %v181 = vadd.f32 0.0, %v180
    %v182 = vpop.f32.mrb[0].mxu0
    %183 = vmatprep.mubr.f32.mxu0 0.0
    %184 = vmatmul.mubr.f32.gmra.mrb[0].mxu0 %v102
    %v185 = vpop.f32.mrb[0].mxu0
    %v186 = vadd.f32 0.0, %v185
    %v187 = vpop.f32.mrb[0].mxu0
    %188 = vdwg.mxu0
    %v189 = vlaneseq
    %v190 = vshrl.u32 %v189, 7
    %v191 = vsub.s32 0, %v190
    %v192 = vrot.slane %v69, %v191
    %v193 = vadd.f32 %v192, %v171
    %v194 = vadd.f32 %v192, %v176
    %v195 = vadd.f32 %v192, %v181
    %v196 = vadd.f32 %v192, %v186
    %v197 = vld [vmem:[%s1 + $0x20] sm:$0xff]
    %v198 = vld [vmem:[%s1 + $0x28] sm:$0xff]
    %v199 = vld [vmem:[%s1 + $0x30] sm:$0xff]
    %v200 = vld [vmem:[%s1 + $0x38] sm:$0xff]
    %vm201 = vcmp.ge.s32.totalorder %v65, 2
    %vm202 = vcmp.ge.s32.totalorder %v66, 2
    %vm203 = vcmp.ge.s32.totalorder %v67, 2
    %vm204 = vcmp.ge.s32.totalorder %v68, 2
    %v205 = vrot.slane %v12, 6
    %v206 = vrot.slane %v13, 6
    %v207 = vrot.slane %v14, 6
    %v208 = vrot.slane %v15, 6
    %vm209 = vcmp.lt.s32.totalorder %v17, 2
    %v210 = vsel %vm209, %v207, %v208
    %v211 = vsel %vm209, %v206, %v207
    %v212 = vsel %vm209, %v205, %v206
    %v213 = vsel %vm209, %v208, %v205
    %v214 = vsel %vm201, %v213, 0.0
    %v215 = vsel %vm202, %v212, 0.0
    %v216 = vsel %vm203, %v211, 0.0
    %v217 = vsel %vm204, %v210, 0.0
    %v219 = vsel %vm91, %v214, 0
    %v222 = vsel %vm91, %v215, 0
    %v225 = vsel %vm91, %v216, 0
    %v228 = vsel %vm91, %v217, 0
    %230 = vmatprep.subr.mxu0 0.0
    %231 = vmatpush1.msra.mxu0 %v197
    %232 = vmatprep.subr.mxu0 0.0
    %233 = vmatpush1.msra.mxu0 %v198
    %234 = vmatprep.subr.mxu0 0.0
    %235 = vmatpush1.msra.mxu0 %v199
    %236 = vmatprep.subr.mxu0 0.0
    %237 = vmatpush1.msra.mxu0 %v200
    %238 = vmatprep.subr.mxu0 0.0
    %239 = vmatpush1.msra.mxu0 0.0
    %240 = vmatprep.subr.mxu0 0.0
    %241 = vmatpush1.msra.mxu0 0.0
    %242 = vmatprep.subr.mxu0 0.0
    %243 = vmatpush1.msra.mxu0 0.0
    %244 = vmatprep.subr.mxu0 0.0
    %245 = vmatpush1.msra.mxu0 0.0
    %246 = vmatprep.subr.mxu0 0.0
    %247 = vmatpush1.msra.mxu0 0.0
    %248 = vmatprep.subr.mxu0 0.0
    %249 = vmatpush1.msra.mxu0 0.0
    %250 = vmatprep.subr.mxu0 0.0
    %251 = vmatpush1.msra.mxu0 0.0
    %252 = vmatprep.subr.mxu0 0.0
    %253 = vmatpush1.msra.mxu0 0.0
    %254 = vmatprep.subr.mxu0 0.0
    %255 = vmatpush1.msra.mxu0 0.0
    %256 = vmatprep.subr.mxu0 0.0
    %257 = vmatpush1.msra.mxu0 0.0
    %258 = vmatprep.subr.mxu0 0.0
    %259 = vmatpush1.msra.mxu0 0.0
    %260 = vmatprep.subr.mxu0 0.0
    %261 = vmatpush1.msra.mxu0 0.0
    %262 = vmatprep.subr.mxu0 0.0
    %263 = vmatpush1.msra.mxu0 0.0
    %264 = vmatprep.subr.mxu0 0.0
    %265 = vmatpush1.msra.mxu0 0.0
    %266 = vmatprep.subr.mxu0 0.0
    %267 = vmatpush1.msra.mxu0 0.0
    %268 = vmatprep.subr.mxu0 0.0
    %269 = vmatpush1.msra.mxu0 0.0
    %270 = vmatprep.subr.mxu0 0.0
    %271 = vmatpush1.msra.mxu0 0.0
    %272 = vmatprep.subr.mxu0 0.0
    %273 = vmatpush1.msra.mxu0 0.0
    %274 = vmatprep.subr.mxu0 0.0
    %275 = vmatpush1.msra.mxu0 0.0
    %276 = vmatprep.subr.mxu0 0.0
    %277 = vmatpush1.msra.mxu0 0.0
    %278 = vmatprep.subr.mxu0 0.0
    %279 = vmatpush1.msra.mxu0 0.0
    %280 = vmatprep.subr.mxu0 0.0
    %281 = vmatpush1.msra.mxu0 0.0
    %282 = vmatprep.subr.mxu0 0.0
    %283 = vmatpush1.msra.mxu0 0.0
    %284 = vmatprep.subr.mxu0 0.0
    %285 = vmatpush1.msra.mxu0 0.0
    %286 = vmatprep.subr.mxu0 0.0
    %287 = vmatpush1.msra.mxu0 0.0
    %288 = vmatprep.subr.mxu0 0.0
    %289 = vmatpush1.msra.mxu0 0.0
    %290 = vmatprep.subr.mxu0 0.0
    %291 = vmatpush1.msra.mxu0 0.0
    %292 = vmatprep.subr.mxu0 0.0
    %293 = vmatpush1.msra.mxu0 0.0
    %294 = vmatprep.mubr.f32.mxu0 0.0
    %295 = vmatmul.mubr.f32.gmra.mrb[0].mxu0 %v219
    %v296 = vpop.f32.mrb[0].mxu0
    %v297 = vadd.f32 0.0, %v296
    %v298 = vpop.f32.mrb[0].mxu0
    %299 = vmatprep.mubr.f32.mxu0 0.0
    %300 = vmatmul.mubr.f32.gmra.mrb[0].mxu0 %v222
    %v301 = vpop.f32.mrb[0].mxu0
    %v302 = vadd.f32 0.0, %v301
    %v303 = vpop.f32.mrb[0].mxu0
    %304 = vmatprep.mubr.f32.mxu0 0.0
    %305 = vmatmul.mubr.f32.gmra.mrb[0].mxu0 %v225
    %v306 = vpop.f32.mrb[0].mxu0
    %v307 = vadd.f32 0.0, %v306
    %v308 = vpop.f32.mrb[0].mxu0
    %309 = vmatprep.mubr.f32.mxu0 0.0
    %310 = vmatmul.mubr.f32.gmra.mrb[0].mxu0 %v228
    %v311 = vpop.f32.mrb[0].mxu0
    %v312 = vadd.f32 0.0, %v311
    %v313 = vpop.f32.mrb[0].mxu0
    %314 = vdwg.mxu0
    %v315 = vadd.f32 %v193, %v297
    %v316 = vadd.f32 %v194, %v302
    %v317 = vadd.f32 %v195, %v307
    %v318 = vadd.f32 %v196, %v312
    %v319 = vld [vmem:[%s1 + $0x40] sm:$0xff]
    %v320 = vld [vmem:[%s1 + $0x48] sm:$0xff]
    %v321 = vld [vmem:[%s1 + $0x50] sm:$0xff]
    %v322 = vld [vmem:[%s1 + $0x58] sm:$0xff]
    %vm323 = vcmp.ge.s32.totalorder %v65, 1
    %vm324 = vcmp.ge.s32.totalorder %v66, 1
    %vm325 = vcmp.ge.s32.totalorder %v67, 1
    %vm326 = vcmp.ge.s32.totalorder %v68, 1
    %v327 = vrot.slane %v12, 7
    %v328 = vrot.slane %v13, 7
    %v329 = vrot.slane %v14, 7
    %v330 = vrot.slane %v15, 7
    %vm331 = vcmp.lt.s32.totalorder %v17, 1
    %v332 = vsel %vm331, %v329, %v330
    %v333 = vsel %vm331, %v328, %v329
    %v334 = vsel %vm331, %v327, %v328
    %v335 = vsel %vm331, %v330, %v327
    %v336 = vsel %vm323, %v335, 0.0
    %v337 = vsel %vm324, %v334, 0.0
    %v338 = vsel %vm325, %v333, 0.0
    %v339 = vsel %vm326, %v332, 0.0
    %v341 = vsel %vm91, %v336, 0
    %v344 = vsel %vm91, %v337, 0
    %v347 = vsel %vm91, %v338, 0
    %v350 = vsel %vm91, %v339, 0
    %352 = vmatprep.subr.mxu0 0.0
    %353 = vmatpush1.msra.mxu0 %v319
    %354 = vmatprep.subr.mxu0 0.0
    %355 = vmatpush1.msra.mxu0 %v320
    %356 = vmatprep.subr.mxu0 0.0
    %357 = vmatpush1.msra.mxu0 %v321
    %358 = vmatprep.subr.mxu0 0.0
    %359 = vmatpush1.msra.mxu0 %v322
    %360 = vmatprep.subr.mxu0 0.0
    %361 = vmatpush1.msra.mxu0 0.0
    %362 = vmatprep.subr.mxu0 0.0
    %363 = vmatpush1.msra.mxu0 0.0
    %364 = vmatprep.subr.mxu0 0.0
    %365 = vmatpush1.msra.mxu0 0.0
    %366 = vmatprep.subr.mxu0 0.0
    %367 = vmatpush1.msra.mxu0 0.0
    %368 = vmatprep.subr.mxu0 0.0
    %369 = vmatpush1.msra.mxu0 0.0
    %370 = vmatprep.subr.mxu0 0.0
    %371 = vmatpush1.msra.mxu0 0.0
    %372 = vmatprep.subr.mxu0 0.0
    %373 = vmatpush1.msra.mxu0 0.0
    %374 = vmatprep.subr.mxu0 0.0
    %375 = vmatpush1.msra.mxu0 0.0
    %376 = vmatprep.subr.mxu0 0.0
    %377 = vmatpush1.msra.mxu0 0.0
    %378 = vmatprep.subr.mxu0 0.0
    %379 = vmatpush1.msra.mxu0 0.0
    %380 = vmatprep.subr.mxu0 0.0
    %381 = vmatpush1.msra.mxu0 0.0
    %382 = vmatprep.subr.mxu0 0.0
    %383 = vmatpush1.msra.mxu0 0.0
    %384 = vmatprep.subr.mxu0 0.0
    %385 = vmatpush1.msra.mxu0 0.0
    %386 = vmatprep.subr.mxu0 0.0
    %387 = vmatpush1.msra.mxu0 0.0
    %388 = vmatprep.subr.mxu0 0.0
    %389 = vmatpush1.msra.mxu0 0.0
    %390 = vmatprep.subr.mxu0 0.0
    %391 = vmatpush1.msra.mxu0 0.0
    %392 = vmatprep.subr.mxu0 0.0
    %393 = vmatpush1.msra.mxu0 0.0
    %394 = vmatprep.subr.mxu0 0.0
    %395 = vmatpush1.msra.mxu0 0.0
    %396 = vmatprep.subr.mxu0 0.0
    %397 = vmatpush1.msra.mxu0 0.0
    %398 = vmatprep.subr.mxu0 0.0
    %399 = vmatpush1.msra.mxu0 0.0
    %400 = vmatprep.subr.mxu0 0.0
    %401 = vmatpush1.msra.mxu0 0.0
    %402 = vmatprep.subr.mxu0 0.0
    %403 = vmatpush1.msra.mxu0 0.0
    %404 = vmatprep.subr.mxu0 0.0
    %405 = vmatpush1.msra.mxu0 0.0
    %406 = vmatprep.subr.mxu0 0.0
    %407 = vmatpush1.msra.mxu0 0.0
    %408 = vmatprep.subr.mxu0 0.0
    %409 = vmatpush1.msra.mxu0 0.0
    %410 = vmatprep.subr.mxu0 0.0
    %411 = vmatpush1.msra.mxu0 0.0
    %412 = vmatprep.subr.mxu0 0.0
    %413 = vmatpush1.msra.mxu0 0.0
    %414 = vmatprep.subr.mxu0 0.0
    %415 = vmatpush1.msra.mxu0 0.0
    %416 = vmatprep.mubr.f32.mxu0 0.0
    %417 = vmatmul.mubr.f32.gmra.mrb[0].mxu0 %v341
    %v418 = vpop.f32.mrb[0].mxu0
    %v419 = vadd.f32 0.0, %v418
    %v420 = vpop.f32.mrb[0].mxu0
    %421 = vmatprep.mubr.f32.mxu0 0.0
    %422 = vmatmul.mubr.f32.gmra.mrb[0].mxu0 %v344
    %v423 = vpop.f32.mrb[0].mxu0
    %v424 = vadd.f32 0.0, %v423
    %v425 = vpop.f32.mrb[0].mxu0
    %426 = vmatprep.mubr.f32.mxu0 0.0
    %427 = vmatmul.mubr.f32.gmra.mrb[0].mxu0 %v347
    %v428 = vpop.f32.mrb[0].mxu0
    %v429 = vadd.f32 0.0, %v428
    %v430 = vpop.f32.mrb[0].mxu0
    %431 = vmatprep.mubr.f32.mxu0 0.0
    %432 = vmatmul.mubr.f32.gmra.mrb[0].mxu0 %v350
    %v433 = vpop.f32.mrb[0].mxu0
    %v434 = vadd.f32 0.0, %v433
    %v435 = vpop.f32.mrb[0].mxu0
    %436 = vdwg.mxu0
    %v437 = vadd.f32 %v315, %v419
    %v438 = vadd.f32 %v316, %v424
    %v439 = vadd.f32 %v317, %v429
    %v440 = vadd.f32 %v318, %v434
    %v441 = vld [vmem:[%s1 + $0x60] sm:$0xff]
    %v442 = vld [vmem:[%s1 + $0x68] sm:$0xff]
    %v443 = vld [vmem:[%s1 + $0x70] sm:$0xff]
    %v444 = vld [vmem:[%s1 + $0x78] sm:$0xff]
    %v446 = vsel %vm91, %v12, 0
    %v449 = vsel %vm91, %v13, 0
    %v452 = vsel %vm91, %v14, 0
    %v455 = vsel %vm91, %v15, 0
    %457 = vmatprep.subr.mxu0 0.0
    %458 = vmatpush1.msra.mxu0 %v441
    %459 = vmatprep.subr.mxu0 0.0
    %460 = vmatpush1.msra.mxu0 %v442
    %461 = vmatprep.subr.mxu0 0.0
    %462 = vmatpush1.msra.mxu0 %v443
    %463 = vmatprep.subr.mxu0 0.0
    %464 = vmatpush1.msra.mxu0 %v444
    %465 = vmatprep.subr.mxu0 0.0
    %466 = vmatpush1.msra.mxu0 0.0
    %467 = vmatprep.subr.mxu0 0.0
    %468 = vmatpush1.msra.mxu0 0.0
    %469 = vmatprep.subr.mxu0 0.0
    %470 = vmatpush1.msra.mxu0 0.0
    %471 = vmatprep.subr.mxu0 0.0
    %472 = vmatpush1.msra.mxu0 0.0
    %473 = vmatprep.subr.mxu0 0.0
    %474 = vmatpush1.msra.mxu0 0.0
    %475 = vmatprep.subr.mxu0 0.0
    %476 = vmatpush1.msra.mxu0 0.0
    %477 = vmatprep.subr.mxu0 0.0
    %478 = vmatpush1.msra.mxu0 0.0
    %479 = vmatprep.subr.mxu0 0.0
    %480 = vmatpush1.msra.mxu0 0.0
    %481 = vmatprep.subr.mxu0 0.0
    %482 = vmatpush1.msra.mxu0 0.0
    %483 = vmatprep.subr.mxu0 0.0
    %484 = vmatpush1.msra.mxu0 0.0
    %485 = vmatprep.subr.mxu0 0.0
    %486 = vmatpush1.msra.mxu0 0.0
    %487 = vmatprep.subr.mxu0 0.0
    %488 = vmatpush1.msra.mxu0 0.0
    %489 = vmatprep.subr.mxu0 0.0
    %490 = vmatpush1.msra.mxu0 0.0
    %491 = vmatprep.subr.mxu0 0.0
    %492 = vmatpush1.msra.mxu0 0.0
    %493 = vmatprep.subr.mxu0 0.0
    %494 = vmatpush1.msra.mxu0 0.0
    %495 = vmatprep.subr.mxu0 0.0
    %496 = vmatpush1.msra.mxu0 0.0
    %497 = vmatprep.subr.mxu0 0.0
    %498 = vmatpush1.msra.mxu0 0.0
    %499 = vmatprep.subr.mxu0 0.0
    %500 = vmatpush1.msra.mxu0 0.0
    %501 = vmatprep.subr.mxu0 0.0
    %502 = vmatpush1.msra.mxu0 0.0
    %503 = vmatprep.subr.mxu0 0.0
    %504 = vmatpush1.msra.mxu0 0.0
    %505 = vmatprep.subr.mxu0 0.0
    %506 = vmatpush1.msra.mxu0 0.0
    %507 = vmatprep.subr.mxu0 0.0
    %508 = vmatpush1.msra.mxu0 0.0
    %509 = vmatprep.subr.mxu0 0.0
    %510 = vmatpush1.msra.mxu0 0.0
    %511 = vmatprep.subr.mxu0 0.0
    %512 = vmatpush1.msra.mxu0 0.0
    %513 = vmatprep.subr.mxu0 0.0
    %514 = vmatpush1.msra.mxu0 0.0
    %515 = vmatprep.subr.mxu0 0.0
    %516 = vmatpush1.msra.mxu0 0.0
    %517 = vmatprep.subr.mxu0 0.0
    %518 = vmatpush1.msra.mxu0 0.0
    %519 = vmatprep.subr.mxu0 0.0
    %520 = vmatpush1.msra.mxu0 0.0
    %521 = vmatprep.mubr.f32.mxu0 0.0
    %522 = vmatmul.mubr.f32.gmra.mrb[0].mxu0 %v446
    %v523 = vpop.f32.mrb[0].mxu0
    %v524 = vadd.f32 0.0, %v523
    %v525 = vpop.f32.mrb[0].mxu0
    %526 = vmatprep.mubr.f32.mxu0 0.0
    %527 = vmatmul.mubr.f32.gmra.mrb[0].mxu0 %v449
    %v528 = vpop.f32.mrb[0].mxu0
    %v529 = vadd.f32 0.0, %v528
    %v530 = vpop.f32.mrb[0].mxu0
    %531 = vmatprep.mubr.f32.mxu0 0.0
    %532 = vmatmul.mubr.f32.gmra.mrb[0].mxu0 %v452
    %v533 = vpop.f32.mrb[0].mxu0
    %v534 = vadd.f32 0.0, %v533
    %v535 = vpop.f32.mrb[0].mxu0
    %536 = vmatprep.mubr.f32.mxu0 0.0
    %537 = vmatmul.mubr.f32.gmra.mrb[0].mxu0 %v455
    %v538 = vpop.f32.mrb[0].mxu0
    %v539 = vadd.f32 0.0, %v538
    %v540 = vpop.f32.mrb[0].mxu0
    %541 = vdwg.mxu0
    %v542 = vadd.f32 %v437, %v524
    %v543 = vadd.f32 %v438, %v529
    %v544 = vadd.f32 %v439, %v534
    %v545 = vadd.f32 %v440, %v539
    %v546 = vmax.f32 %v542, 0.0
    %v547 = vmax.f32 %v543, 0.0
    %v548 = vmax.f32 %v544, 0.0
    %v549 = vmax.f32 %v545, 0.0
    %v550 = vld [vmem:[%s1 + $0x108] sm:$0x1]
    %v551 = vld [vmem:[%s1 + $0x88] sm:$0xff]
    %v552 = vld [vmem:[%s1 + $0x90] sm:$0xff]
    %v553 = vld [vmem:[%s1 + $0x98] sm:$0xff]
    %v554 = vld [vmem:[%s1 + $0xa0] sm:$0xff]
    %v555 = vrot.slane %v546, 5
    %v556 = vrot.slane %v547, 5
    %v557 = vrot.slane %v548, 5
    %v558 = vrot.slane %v549, 5
    %v559 = vsel %vm82, %v557, %v558
    %v560 = vsel %vm82, %v556, %v557
    %v561 = vsel %vm82, %v555, %v556
    %v562 = vsel %vm82, %v558, %v555
    %v563 = vsel %vm74, %v562, 0.0
    %v564 = vsel %vm75, %v561, 0.0
    %v565 = vsel %vm76, %v560, 0.0
    %v566 = vsel %vm77, %v559, 0.0
    %v568 = vsel %vm91, %v563, 0
    %v571 = vsel %vm91, %v564, 0
    %v574 = vsel %vm91, %v565, 0
    %v577 = vsel %vm91, %v566, 0
    %579 = vmatprep.subr.mxu0 0.0
    %580 = vmatpush1.msra.mxu0 %v551
    %581 = vmatprep.subr.mxu0 0.0
    %582 = vmatpush1.msra.mxu0 %v552
    %583 = vmatprep.subr.mxu0 0.0
    %584 = vmatpush1.msra.mxu0 %v553
    %585 = vmatprep.subr.mxu0 0.0
    %586 = vmatpush1.msra.mxu0 %v554
    %587 = vmatprep.subr.mxu0 0.0
    %588 = vmatpush1.msra.mxu0 0.0
    %589 = vmatprep.subr.mxu0 0.0
    %590 = vmatpush1.msra.mxu0 0.0
    %591 = vmatprep.subr.mxu0 0.0
    %592 = vmatpush1.msra.mxu0 0.0
    %593 = vmatprep.subr.mxu0 0.0
    %594 = vmatpush1.msra.mxu0 0.0
    %595 = vmatprep.subr.mxu0 0.0
    %596 = vmatpush1.msra.mxu0 0.0
    %597 = vmatprep.subr.mxu0 0.0
    %598 = vmatpush1.msra.mxu0 0.0
    %599 = vmatprep.subr.mxu0 0.0
    %600 = vmatpush1.msra.mxu0 0.0
    %601 = vmatprep.subr.mxu0 0.0
    %602 = vmatpush1.msra.mxu0 0.0
    %603 = vmatprep.subr.mxu0 0.0
    %604 = vmatpush1.msra.mxu0 0.0
    %605 = vmatprep.subr.mxu0 0.0
    %606 = vmatpush1.msra.mxu0 0.0
    %607 = vmatprep.subr.mxu0 0.0
    %608 = vmatpush1.msra.mxu0 0.0
    %609 = vmatprep.subr.mxu0 0.0
    %610 = vmatpush1.msra.mxu0 0.0
    %611 = vmatprep.subr.mxu0 0.0
    %612 = vmatpush1.msra.mxu0 0.0
    %613 = vmatprep.subr.mxu0 0.0
    %614 = vmatpush1.msra.mxu0 0.0
    %615 = vmatprep.subr.mxu0 0.0
    %616 = vmatpush1.msra.mxu0 0.0
    %617 = vmatprep.subr.mxu0 0.0
    %618 = vmatpush1.msra.mxu0 0.0
    %619 = vmatprep.subr.mxu0 0.0
    %620 = vmatpush1.msra.mxu0 0.0
    %621 = vmatprep.subr.mxu0 0.0
    %622 = vmatpush1.msra.mxu0 0.0
    %623 = vmatprep.subr.mxu0 0.0
    %624 = vmatpush1.msra.mxu0 0.0
    %625 = vmatprep.subr.mxu0 0.0
    %626 = vmatpush1.msra.mxu0 0.0
    %627 = vmatprep.subr.mxu0 0.0
    %628 = vmatpush1.msra.mxu0 0.0
    %629 = vmatprep.subr.mxu0 0.0
    %630 = vmatpush1.msra.mxu0 0.0
    %631 = vmatprep.subr.mxu0 0.0
    %632 = vmatpush1.msra.mxu0 0.0
    %633 = vmatprep.subr.mxu0 0.0
    %634 = vmatpush1.msra.mxu0 0.0
    %635 = vmatprep.subr.mxu0 0.0
    %636 = vmatpush1.msra.mxu0 0.0
    %637 = vmatprep.subr.mxu0 0.0
    %638 = vmatpush1.msra.mxu0 0.0
    %639 = vmatprep.subr.mxu0 0.0
    %640 = vmatpush1.msra.mxu0 0.0
    %641 = vmatprep.subr.mxu0 0.0
    %642 = vmatpush1.msra.mxu0 0.0
    %643 = vmatprep.mubr.f32.mxu0 0.0
    %644 = vmatmul.mubr.f32.gmra.mrb[0].mxu0 %v568
    %v645 = vpop.f32.mrb[0].mxu0
    %v646 = vadd.f32 0.0, %v645
    %v647 = vpop.f32.mrb[0].mxu0
    %648 = vmatprep.mubr.f32.mxu0 0.0
    %649 = vmatmul.mubr.f32.gmra.mrb[0].mxu0 %v571
    %v650 = vpop.f32.mrb[0].mxu0
    %v651 = vadd.f32 0.0, %v650
    %v652 = vpop.f32.mrb[0].mxu0
    %653 = vmatprep.mubr.f32.mxu0 0.0
    %654 = vmatmul.mubr.f32.gmra.mrb[0].mxu0 %v574
    %v655 = vpop.f32.mrb[0].mxu0
    %v656 = vadd.f32 0.0, %v655
    %v657 = vpop.f32.mrb[0].mxu0
    %658 = vmatprep.mubr.f32.mxu0 0.0
    %659 = vmatmul.mubr.f32.gmra.mrb[0].mxu0 %v577
    %v660 = vpop.f32.mrb[0].mxu0
    %v661 = vadd.f32 0.0, %v660
    %v662 = vpop.f32.mrb[0].mxu0
    %663 = vdwg.mxu0
    %v664 = vlaneseq
    %v665 = vshrl.u32 %v664, 7
    %v666 = vsub.s32 0, %v665
    %v667 = vrot.slane %v550, %v666
    %v668 = vadd.f32 %v667, %v646
    %v669 = vadd.f32 %v667, %v651
    %v670 = vadd.f32 %v667, %v656
    %v671 = vadd.f32 %v667, %v661
    %v672 = vld [vmem:[%s1 + $0xa8] sm:$0xff]
    %v673 = vld [vmem:[%s1 + $0xb0] sm:$0xff]
    %v674 = vld [vmem:[%s1 + $0xb8] sm:$0xff]
    %v675 = vld [vmem:[%s1 + $0xc0] sm:$0xff]
    %v676 = vrot.slane %v546, 6
    %v677 = vrot.slane %v547, 6
    %v678 = vrot.slane %v548, 6
    %v679 = vrot.slane %v549, 6
    %v680 = vsel %vm209, %v678, %v679
    %v681 = vsel %vm209, %v677, %v678
    %v682 = vsel %vm209, %v676, %v677
    %v683 = vsel %vm209, %v679, %v676
    %v684 = vsel %vm201, %v683, 0.0
    %v685 = vsel %vm202, %v682, 0.0
    %v686 = vsel %vm203, %v681, 0.0
    %v687 = vsel %vm204, %v680, 0.0
    %v689 = vsel %vm91, %v684, 0
    %v692 = vsel %vm91, %v685, 0
    %v695 = vsel %vm91, %v686, 0
    %v698 = vsel %vm91, %v687, 0
    %700 = vmatprep.subr.mxu0 0.0
    %701 = vmatpush1.msra.mxu0 %v672
    %702 = vmatprep.subr.mxu0 0.0
    %703 = vmatpush1.msra.mxu0 %v673
    %704 = vmatprep.subr.mxu0 0.0
    %705 = vmatpush1.msra.mxu0 %v674
    %706 = vmatprep.subr.mxu0 0.0
    %707 = vmatpush1.msra.mxu0 %v675
    %708 = vmatprep.subr.mxu0 0.0
    %709 = vmatpush1.msra.mxu0 0.0
    %710 = vmatprep.subr.mxu0 0.0
    %711 = vmatpush1.msra.mxu0 0.0
    %712 = vmatprep.subr.mxu0 0.0
    %713 = vmatpush1.msra.mxu0 0.0
    %714 = vmatprep.subr.mxu0 0.0
    %715 = vmatpush1.msra.mxu0 0.0
    %716 = vmatprep.subr.mxu0 0.0
    %717 = vmatpush1.msra.mxu0 0.0
    %718 = vmatprep.subr.mxu0 0.0
    %719 = vmatpush1.msra.mxu0 0.0
    %720 = vmatprep.subr.mxu0 0.0
    %721 = vmatpush1.msra.mxu0 0.0
    %722 = vmatprep.subr.mxu0 0.0
    %723 = vmatpush1.msra.mxu0 0.0
    %724 = vmatprep.subr.mxu0 0.0
    %725 = vmatpush1.msra.mxu0 0.0
    %726 = vmatprep.subr.mxu0 0.0
    %727 = vmatpush1.msra.mxu0 0.0
    %728 = vmatprep.subr.mxu0 0.0
    %729 = vmatpush1.msra.mxu0 0.0
    %730 = vmatprep.subr.mxu0 0.0
    %731 = vmatpush1.msra.mxu0 0.0
    %732 = vmatprep.subr.mxu0 0.0
    %733 = vmatpush1.msra.mxu0 0.0
    %734 = vmatprep.subr.mxu0 0.0
    %735 = vmatpush1.msra.mxu0 0.0
    %736 = vmatprep.subr.mxu0 0.0
    %737 = vmatpush1.msra.mxu0 0.0
    %738 = vmatprep.subr.mxu0 0.0
    %739 = vmatpush1.msra.mxu0 0.0
    %740 = vmatprep.subr.mxu0 0.0
    %741 = vmatpush1.msra.mxu0 0.0
    %742 = vmatprep.subr.mxu0 0.0
    %743 = vmatpush1.msra.mxu0 0.0
    %744 = vmatprep.subr.mxu0 0.0
    %745 = vmatpush1.msra.mxu0 0.0
    %746 = vmatprep.subr.mxu0 0.0
    %747 = vmatpush1.msra.mxu0 0.0
    %748 = vmatprep.subr.mxu0 0.0
    %749 = vmatpush1.msra.mxu0 0.0
    %750 = vmatprep.subr.mxu0 0.0
    %751 = vmatpush1.msra.mxu0 0.0
    %752 = vmatprep.subr.mxu0 0.0
    %753 = vmatpush1.msra.mxu0 0.0
    %754 = vmatprep.subr.mxu0 0.0
    %755 = vmatpush1.msra.mxu0 0.0
    %756 = vmatprep.subr.mxu0 0.0
    %757 = vmatpush1.msra.mxu0 0.0
    %758 = vmatprep.subr.mxu0 0.0
    %759 = vmatpush1.msra.mxu0 0.0
    %760 = vmatprep.subr.mxu0 0.0
    %761 = vmatpush1.msra.mxu0 0.0
    %762 = vmatprep.subr.mxu0 0.0
    %763 = vmatpush1.msra.mxu0 0.0
    %764 = vmatprep.mubr.f32.mxu0 0.0
    %765 = vmatmul.mubr.f32.gmra.mrb[0].mxu0 %v689
    %v766 = vpop.f32.mrb[0].mxu0
    %v767 = vadd.f32 0.0, %v766
    %v768 = vpop.f32.mrb[0].mxu0
    %769 = vmatprep.mubr.f32.mxu0 0.0
    %770 = vmatmul.mubr.f32.gmra.mrb[0].mxu0 %v692
    %v771 = vpop.f32.mrb[0].mxu0
    %v772 = vadd.f32 0.0, %v771
    %v773 = vpop.f32.mrb[0].mxu0
    %774 = vmatprep.mubr.f32.mxu0 0.0
    %775 = vmatmul.mubr.f32.gmra.mrb[0].mxu0 %v695
    %v776 = vpop.f32.mrb[0].mxu0
    %v777 = vadd.f32 0.0, %v776
    %v778 = vpop.f32.mrb[0].mxu0
    %779 = vmatprep.mubr.f32.mxu0 0.0
    %780 = vmatmul.mubr.f32.gmra.mrb[0].mxu0 %v698
    %v781 = vpop.f32.mrb[0].mxu0
    %v782 = vadd.f32 0.0, %v781
    %v783 = vpop.f32.mrb[0].mxu0
    %784 = vdwg.mxu0
    %v785 = vadd.f32 %v668, %v767
    %v786 = vadd.f32 %v669, %v772
    %v787 = vadd.f32 %v670, %v777
    %v788 = vadd.f32 %v671, %v782
    %v789 = vld [vmem:[%s1 + $0xc8] sm:$0xff]
    %v790 = vld [vmem:[%s1 + $0xd0] sm:$0xff]
    %v791 = vld [vmem:[%s1 + $0xd8] sm:$0xff]
    %v792 = vld [vmem:[%s1 + $0xe0] sm:$0xff]
    %v793 = vrot.slane %v546, 7
    %v794 = vrot.slane %v547, 7
    %v795 = vrot.slane %v548, 7
    %v796 = vrot.slane %v549, 7
    %v797 = vsel %vm331, %v795, %v796
    %v798 = vsel %vm331, %v794, %v795
    %v799 = vsel %vm331, %v793, %v794
    %v800 = vsel %vm331, %v796, %v793
    %v801 = vsel %vm323, %v800, 0.0
    %v802 = vsel %vm324, %v799, 0.0
    %v803 = vsel %vm325, %v798, 0.0
    %v804 = vsel %vm326, %v797, 0.0
    %v806 = vsel %vm91, %v801, 0
    %v809 = vsel %vm91, %v802, 0
    %v812 = vsel %vm91, %v803, 0
    %v815 = vsel %vm91, %v804, 0
    %817 = vmatprep.subr.mxu0 0.0
    %818 = vmatpush1.msra.mxu0 %v789
    %819 = vmatprep.subr.mxu0 0.0
    %820 = vmatpush1.msra.mxu0 %v790
    %821 = vmatprep.subr.mxu0 0.0
    %822 = vmatpush1.msra.mxu0 %v791
    %823 = vmatprep.subr.mxu0 0.0
    %824 = vmatpush1.msra.mxu0 %v792
    %825 = vmatprep.subr.mxu0 0.0
    %826 = vmatpush1.msra.mxu0 0.0
    %827 = vmatprep.subr.mxu0 0.0
    %828 = vmatpush1.msra.mxu0 0.0
    %829 = vmatprep.subr.mxu0 0.0
    %830 = vmatpush1.msra.mxu0 0.0
    %831 = vmatprep.subr.mxu0 0.0
    %832 = vmatpush1.msra.mxu0 0.0
    %833 = vmatprep.subr.mxu0 0.0
    %834 = vmatpush1.msra.mxu0 0.0
    %835 = vmatprep.subr.mxu0 0.0
    %836 = vmatpush1.msra.mxu0 0.0
    %837 = vmatprep.subr.mxu0 0.0
    %838 = vmatpush1.msra.mxu0 0.0
    %839 = vmatprep.subr.mxu0 0.0
    %840 = vmatpush1.msra.mxu0 0.0
    %841 = vmatprep.subr.mxu0 0.0
    %842 = vmatpush1.msra.mxu0 0.0
    %843 = vmatprep.subr.mxu0 0.0
    %844 = vmatpush1.msra.mxu0 0.0
    %845 = vmatprep.subr.mxu0 0.0
    %846 = vmatpush1.msra.mxu0 0.0
    %847 = vmatprep.subr.mxu0 0.0
    %848 = vmatpush1.msra.mxu0 0.0
    %849 = vmatprep.subr.mxu0 0.0
    %850 = vmatpush1.msra.mxu0 0.0
    %851 = vmatprep.subr.mxu0 0.0
    %852 = vmatpush1.msra.mxu0 0.0
    %853 = vmatprep.subr.mxu0 0.0
    %854 = vmatpush1.msra.mxu0 0.0
    %855 = vmatprep.subr.mxu0 0.0
    %856 = vmatpush1.msra.mxu0 0.0
    %857 = vmatprep.subr.mxu0 0.0
    %858 = vmatpush1.msra.mxu0 0.0
    %859 = vmatprep.subr.mxu0 0.0
    %860 = vmatpush1.msra.mxu0 0.0
    %861 = vmatprep.subr.mxu0 0.0
    %862 = vmatpush1.msra.mxu0 0.0
    %863 = vmatprep.subr.mxu0 0.0
    %864 = vmatpush1.msra.mxu0 0.0
    %865 = vmatprep.subr.mxu0 0.0
    %866 = vmatpush1.msra.mxu0 0.0
    %867 = vmatprep.subr.mxu0 0.0
    %868 = vmatpush1.msra.mxu0 0.0
    %869 = vmatprep.subr.mxu0 0.0
    %870 = vmatpush1.msra.mxu0 0.0
    %871 = vmatprep.subr.mxu0 0.0
    %872 = vmatpush1.msra.mxu0 0.0
    %873 = vmatprep.subr.mxu0 0.0
    %874 = vmatpush1.msra.mxu0 0.0
    %875 = vmatprep.subr.mxu0 0.0
    %876 = vmatpush1.msra.mxu0 0.0
    %877 = vmatprep.subr.mxu0 0.0
    %878 = vmatpush1.msra.mxu0 0.0
    %879 = vmatprep.subr.mxu0 0.0
    %880 = vmatpush1.msra.mxu0 0.0
    %881 = vmatprep.mubr.f32.mxu0 0.0
    %882 = vmatmul.mubr.f32.gmra.mrb[0].mxu0 %v806
    %v883 = vpop.f32.mrb[0].mxu0
    %v884 = vadd.f32 0.0, %v883
    %v885 = vpop.f32.mrb[0].mxu0
    %886 = vmatprep.mubr.f32.mxu0 0.0
    %887 = vmatmul.mubr.f32.gmra.mrb[0].mxu0 %v809
    %v888 = vpop.f32.mrb[0].mxu0
    %v889 = vadd.f32 0.0, %v888
    %v890 = vpop.f32.mrb[0].mxu0
    %891 = vmatprep.mubr.f32.mxu0 0.0
    %892 = vmatmul.mubr.f32.gmra.mrb[0].mxu0 %v812
    %v893 = vpop.f32.mrb[0].mxu0
    %v894 = vadd.f32 0.0, %v893
    %v895 = vpop.f32.mrb[0].mxu0
    %896 = vmatprep.mubr.f32.mxu0 0.0
    %897 = vmatmul.mubr.f32.gmra.mrb[0].mxu0 %v815
    %v898 = vpop.f32.mrb[0].mxu0
    %v899 = vadd.f32 0.0, %v898
    %v900 = vpop.f32.mrb[0].mxu0
    %901 = vdwg.mxu0
    %v902 = vadd.f32 %v785, %v884
    %v903 = vadd.f32 %v786, %v889
    %v904 = vadd.f32 %v787, %v894
    %v905 = vadd.f32 %v788, %v899
    %v906 = vld [vmem:[%s1 + $0xe8] sm:$0xff]
    %v907 = vld [vmem:[%s1 + $0xf0] sm:$0xff]
    %v908 = vld [vmem:[%s1 + $0xf8] sm:$0xff]
    %v909 = vld [vmem:[%s1 + $0x100] sm:$0xff]
    %v911 = vsel %vm91, %v546, 0
    %v914 = vsel %vm91, %v547, 0
    %v917 = vsel %vm91, %v548, 0
    %v920 = vsel %vm91, %v549, 0
    %922 = vmatprep.subr.mxu0 0.0
    %923 = vmatpush1.msra.mxu0 %v906
    %924 = vmatprep.subr.mxu0 0.0
    %925 = vmatpush1.msra.mxu0 %v907
    %926 = vmatprep.subr.mxu0 0.0
    %927 = vmatpush1.msra.mxu0 %v908
    %928 = vmatprep.subr.mxu0 0.0
    %929 = vmatpush1.msra.mxu0 %v909
    %930 = vmatprep.subr.mxu0 0.0
    %931 = vmatpush1.msra.mxu0 0.0
    %932 = vmatprep.subr.mxu0 0.0
    %933 = vmatpush1.msra.mxu0 0.0
    %934 = vmatprep.subr.mxu0 0.0
    %935 = vmatpush1.msra.mxu0 0.0
    %936 = vmatprep.subr.mxu0 0.0
    %937 = vmatpush1.msra.mxu0 0.0
    %938 = vmatprep.subr.mxu0 0.0
    %939 = vmatpush1.msra.mxu0 0.0
    %940 = vmatprep.subr.mxu0 0.0
    %941 = vmatpush1.msra.mxu0 0.0
    %942 = vmatprep.subr.mxu0 0.0
    %943 = vmatpush1.msra.mxu0 0.0
    %944 = vmatprep.subr.mxu0 0.0
    %945 = vmatpush1.msra.mxu0 0.0
    %946 = vmatprep.subr.mxu0 0.0
    %947 = vmatpush1.msra.mxu0 0.0
    %948 = vmatprep.subr.mxu0 0.0
    %949 = vmatpush1.msra.mxu0 0.0
    %950 = vmatprep.subr.mxu0 0.0
    %951 = vmatpush1.msra.mxu0 0.0
    %952 = vmatprep.subr.mxu0 0.0
    %953 = vmatpush1.msra.mxu0 0.0
    %954 = vmatprep.subr.mxu0 0.0
    %955 = vmatpush1.msra.mxu0 0.0
    %956 = vmatprep.subr.mxu0 0.0
    %957 = vmatpush1.msra.mxu0 0.0
    %958 = vmatprep.subr.mxu0 0.0
    %959 = vmatpush1.msra.mxu0 0.0
    %960 = vmatprep.subr.mxu0 0.0
    %961 = vmatpush1.msra.mxu0 0.0
    %962 = vmatprep.subr.mxu0 0.0
    %963 = vmatpush1.msra.mxu0 0.0
    %964 = vmatprep.subr.mxu0 0.0
    %965 = vmatpush1.msra.mxu0 0.0
    %966 = vmatprep.subr.mxu0 0.0
    %967 = vmatpush1.msra.mxu0 0.0
    %968 = vmatprep.subr.mxu0 0.0
    %969 = vmatpush1.msra.mxu0 0.0
    %970 = vmatprep.subr.mxu0 0.0
    %971 = vmatpush1.msra.mxu0 0.0
    %972 = vmatprep.subr.mxu0 0.0
    %973 = vmatpush1.msra.mxu0 0.0
    %974 = vmatprep.subr.mxu0 0.0
    %975 = vmatpush1.msra.mxu0 0.0
    %976 = vmatprep.subr.mxu0 0.0
    %977 = vmatpush1.msra.mxu0 0.0
    %978 = vmatprep.subr.mxu0 0.0
    %979 = vmatpush1.msra.mxu0 0.0
    %980 = vmatprep.subr.mxu0 0.0
    %981 = vmatpush1.msra.mxu0 0.0
    %982 = vmatprep.subr.mxu0 0.0
    %983 = vmatpush1.msra.mxu0 0.0
    %984 = vmatprep.subr.mxu0 0.0
    %985 = vmatpush1.msra.mxu0 0.0
    %986 = vmatprep.mubr.f32.mxu0 0.0
    %987 = vmatmul.mubr.f32.gmra.mrb[0].mxu0 %v911
    %v988 = vpop.f32.mrb[0].mxu0
    %v989 = vadd.f32 0.0, %v988
    %v990 = vpop.f32.mrb[0].mxu0
    %991 = vmatprep.mubr.f32.mxu0 0.0
    %992 = vmatmul.mubr.f32.gmra.mrb[0].mxu0 %v914
    %v993 = vpop.f32.mrb[0].mxu0
    %v994 = vadd.f32 0.0, %v993
    %v995 = vpop.f32.mrb[0].mxu0
    %996 = vmatprep.mubr.f32.mxu0 0.0
    %997 = vmatmul.mubr.f32.gmra.mrb[0].mxu0 %v917
    %v998 = vpop.f32.mrb[0].mxu0
    %v999 = vadd.f32 0.0, %v998
    %v1000 = vpop.f32.mrb[0].mxu0
    %1001 = vmatprep.mubr.f32.mxu0 0.0
    %1002 = vmatmul.mubr.f32.gmra.mrb[0].mxu0 %v920
    %v1003 = vpop.f32.mrb[0].mxu0
    %v1004 = vadd.f32 0.0, %v1003
    %v1005 = vpop.f32.mrb[0].mxu0
    %1006 = vdwg.mxu0
    %v1007 = vadd.f32 %v902, %v989
    %v1008 = vadd.f32 %v903, %v994
    %v1009 = vadd.f32 %v904, %v999
    %v1010 = vadd.f32 %v905, %v1004
    %v1011 = vmax.f32 %v1007, 0.0
    %v1012 = vmax.f32 %v1008, 0.0
    %v1013 = vmax.f32 %v1009, 0.0
    %v1014 = vmax.f32 %v1010, 0.0
    %v1015 = vld [vmem:[%s1 + $0x110] sm:$0xff]
    %v1016 = vld [vmem:[%s1 + $0x118] sm:$0xff]
    %v1017 = vld [vmem:[%s1 + $0x120] sm:$0xff]
    %v1018 = vld [vmem:[%s1 + $0x128] sm:$0xff]
    %v1019 = vld [vmem:[%s1 + $0x130] sm:$0x1]
    %v1020 = vlaneseq
    %v1021 = vshrl.u32 %v1020, 7
    %v1022 = vsub.s32 0, %v1021
    %v1023 = vrot.slane %v1019, %v1022
    %1024 = vmatprep.subr.mxu0 0.0
    %1025 = vmatpush1.msra.mxu0 %v1015
    %1026 = vmatprep.subr.mxu0 0.0
    %1027 = vmatpush1.msra.mxu0 %v1016
    %1028 = vmatprep.subr.mxu0 0.0
    %1029 = vmatpush1.msra.mxu0 %v1017
    %1030 = vmatprep.subr.mxu0 0.0
    %1031 = vmatpush1.msra.mxu0 %v1018
    %1032 = vmatprep.subr.mxu0 0.0
    %1033 = vmatpush1.msra.mxu0 0.0
    %1034 = vmatprep.subr.mxu0 0.0
    %1035 = vmatpush1.msra.mxu0 0.0
    %1036 = vmatprep.subr.mxu0 0.0
    %1037 = vmatpush1.msra.mxu0 0.0
    %1038 = vmatprep.subr.mxu0 0.0
    %1039 = vmatpush1.msra.mxu0 0.0
    %1040 = vmatprep.subr.mxu0 0.0
    %1041 = vmatpush1.msra.mxu0 0.0
    %1042 = vmatprep.subr.mxu0 0.0
    %1043 = vmatpush1.msra.mxu0 0.0
    %1044 = vmatprep.subr.mxu0 0.0
    %1045 = vmatpush1.msra.mxu0 0.0
    %1046 = vmatprep.subr.mxu0 0.0
    %1047 = vmatpush1.msra.mxu0 0.0
    %1048 = vmatprep.subr.mxu0 0.0
    %1049 = vmatpush1.msra.mxu0 0.0
    %1050 = vmatprep.subr.mxu0 0.0
    %1051 = vmatpush1.msra.mxu0 0.0
    %1052 = vmatprep.subr.mxu0 0.0
    %1053 = vmatpush1.msra.mxu0 0.0
    %1054 = vmatprep.subr.mxu0 0.0
    %1055 = vmatpush1.msra.mxu0 0.0
    %1056 = vmatprep.subr.mxu0 0.0
    %1057 = vmatpush1.msra.mxu0 0.0
    %1058 = vmatprep.subr.mxu0 0.0
    %1059 = vmatpush1.msra.mxu0 0.0
    %1060 = vmatprep.subr.mxu0 0.0
    %1061 = vmatpush1.msra.mxu0 0.0
    %1062 = vmatprep.subr.mxu0 0.0
    %1063 = vmatpush1.msra.mxu0 0.0
    %1064 = vmatprep.subr.mxu0 0.0
    %1065 = vmatpush1.msra.mxu0 0.0
    %1066 = vmatprep.subr.mxu0 0.0
    %1067 = vmatpush1.msra.mxu0 0.0
    %1068 = vmatprep.subr.mxu0 0.0
    %1069 = vmatpush1.msra.mxu0 0.0
    %1070 = vmatprep.subr.mxu0 0.0
    %1071 = vmatpush1.msra.mxu0 0.0
    %1072 = vmatprep.subr.mxu0 0.0
    %1073 = vmatpush1.msra.mxu0 0.0
    %1074 = vmatprep.subr.mxu0 0.0
    %1075 = vmatpush1.msra.mxu0 0.0
    %1076 = vmatprep.subr.mxu0 0.0
    %1077 = vmatpush1.msra.mxu0 0.0
    %1078 = vmatprep.subr.mxu0 0.0
    %1079 = vmatpush1.msra.mxu0 0.0
    %1080 = vmatprep.subr.mxu0 0.0
    %1081 = vmatpush1.msra.mxu0 0.0
    %1082 = vmatprep.subr.mxu0 0.0
    %1083 = vmatpush1.msra.mxu0 0.0
    %1084 = vmatprep.subr.mxu0 0.0
    %1085 = vmatpush1.msra.mxu0 0.0
    %1086 = vmatprep.subr.mxu0 0.0
    %1087 = vmatpush1.msra.mxu0 0.0
    %1088 = vmatprep.mubr.f32.mxu0 0.0
    %1089 = vmatmul.mubr.f32.gmra.mrb[0].mxu0 %v446
    %v1090 = vpop.f32.mrb[0].mxu0
    %v1091 = vadd.f32 %v1023, %v1090
    %v1092 = vpop.f32.mrb[0].mxu0
    %1093 = vmatprep.mubr.f32.mxu0 0.0
    %1094 = vmatmul.mubr.f32.gmra.mrb[0].mxu0 %v449
    %v1095 = vpop.f32.mrb[0].mxu0
    %v1096 = vadd.f32 %v1023, %v1095
    %v1097 = vpop.f32.mrb[0].mxu0
    %1098 = vmatprep.mubr.f32.mxu0 0.0
    %1099 = vmatmul.mubr.f32.gmra.mrb[0].mxu0 %v452
    %v1100 = vpop.f32.mrb[0].mxu0
    %v1101 = vadd.f32 %v1023, %v1100
    %v1102 = vpop.f32.mrb[0].mxu0
    %1103 = vmatprep.mubr.f32.mxu0 0.0
    %1104 = vmatmul.mubr.f32.gmra.mrb[0].mxu0 %v455
    %v1105 = vpop.f32.mrb[0].mxu0
    %v1106 = vadd.f32 %v1023, %v1105
    %v1107 = vpop.f32.mrb[0].mxu0
    %1108 = vdwg.mxu0
    %v1109 = vadd.f32 %v1011, %v1091
    %v1110 = vadd.f32 %v1012, %v1096
    %v1111 = vadd.f32 %v1013, %v1101
    %v1112 = vadd.f32 %v1014, %v1106
    %v1113 = vmax.f32 %v1109, 0.0
    %v1114 = vmax.f32 %v1110, 0.0
    %v1115 = vmax.f32 %v1111, 0.0
    %v1116 = vmax.f32 %v1112, 0.0
    %v1117 = vld [vmem:[%s1 + $0x1b8] sm:$0x1]
    %v1118 = vld [vmem:[%s1 + $0x138] sm:$0xff]
    %v1119 = vld [vmem:[%s1 + $0x140] sm:$0xff]
    %v1120 = vld [vmem:[%s1 + $0x148] sm:$0xff]
    %v1121 = vld [vmem:[%s1 + $0x150] sm:$0xff]
    %vm1122 = vcmp.ge.s32.totalorder %v65, 6
    %vm1123 = vcmp.ge.s32.totalorder %v66, 6
    %vm1124 = vcmp.ge.s32.totalorder %v67, 6
    %vm1125 = vcmp.ge.s32.totalorder %v68, 6
    %v1126 = vrot.slane %v1113, 2
    %v1127 = vrot.slane %v1114, 2
    %v1128 = vrot.slane %v1115, 2
    %v1129 = vrot.slane %v1116, 2
    %vm1130 = vcmp.lt.s32.totalorder %v17, 6
    %v1131 = vsel %vm1130, %v1128, %v1129
    %v1132 = vsel %vm1130, %v1127, %v1128
    %v1133 = vsel %vm1130, %v1126, %v1127
    %v1134 = vsel %vm1130, %v1129, %v1126
    %v1135 = vsel %vm1122, %v1134, 0.0
    %v1136 = vsel %vm1123, %v1133, 0.0
    %v1137 = vsel %vm1124, %v1132, 0.0
    %v1138 = vsel %vm1125, %v1131, 0.0
    %v1140 = vsel %vm91, %v1135, 0
    %v1143 = vsel %vm91, %v1136, 0
    %v1146 = vsel %vm91, %v1137, 0
    %v1149 = vsel %vm91, %v1138, 0
    %1151 = vmatprep.subr.mxu0 0.0
    %1152 = vmatpush1.msra.mxu0 %v1118
    %1153 = vmatprep.subr.mxu0 0.0
    %1154 = vmatpush1.msra.mxu0 %v1119
    %1155 = vmatprep.subr.mxu0 0.0
    %1156 = vmatpush1.msra.mxu0 %v1120
    %1157 = vmatprep.subr.mxu0 0.0
    %1158 = vmatpush1.msra.mxu0 %v1121
    %1159 = vmatprep.subr.mxu0 0.0
    %1160 = vmatpush1.msra.mxu0 0.0
    %1161 = vmatprep.subr.mxu0 0.0
    %1162 = vmatpush1.msra.mxu0 0.0
    %1163 = vmatprep.subr.mxu0 0.0
    %1164 = vmatpush1.msra.mxu0 0.0
    %1165 = vmatprep.subr.mxu0 0.0
    %1166 = vmatpush1.msra.mxu0 0.0
    %1167 = vmatprep.subr.mxu0 0.0
    %1168 = vmatpush1.msra.mxu0 0.0
    %1169 = vmatprep.subr.mxu0 0.0
    %1170 = vmatpush1.msra.mxu0 0.0
    %1171 = vmatprep.subr.mxu0 0.0
    %1172 = vmatpush1.msra.mxu0 0.0
    %1173 = vmatprep.subr.mxu0 0.0
    %1174 = vmatpush1.msra.mxu0 0.0
    %1175 = vmatprep.subr.mxu0 0.0
    %1176 = vmatpush1.msra.mxu0 0.0
    %1177 = vmatprep.subr.mxu0 0.0
    %1178 = vmatpush1.msra.mxu0 0.0
    %1179 = vmatprep.subr.mxu0 0.0
    %1180 = vmatpush1.msra.mxu0 0.0
    %1181 = vmatprep.subr.mxu0 0.0
    %1182 = vmatpush1.msra.mxu0 0.0
    %1183 = vmatprep.subr.mxu0 0.0
    %1184 = vmatpush1.msra.mxu0 0.0
    %1185 = vmatprep.subr.mxu0 0.0
    %1186 = vmatpush1.msra.mxu0 0.0
    %1187 = vmatprep.subr.mxu0 0.0
    %1188 = vmatpush1.msra.mxu0 0.0
    %1189 = vmatprep.subr.mxu0 0.0
    %1190 = vmatpush1.msra.mxu0 0.0
    %1191 = vmatprep.subr.mxu0 0.0
    %1192 = vmatpush1.msra.mxu0 0.0
    %1193 = vmatprep.subr.mxu0 0.0
    %1194 = vmatpush1.msra.mxu0 0.0
    %1195 = vmatprep.subr.mxu0 0.0
    %1196 = vmatpush1.msra.mxu0 0.0
    %1197 = vmatprep.subr.mxu0 0.0
    %1198 = vmatpush1.msra.mxu0 0.0
    %1199 = vmatprep.subr.mxu0 0.0
    %1200 = vmatpush1.msra.mxu0 0.0
    %1201 = vmatprep.subr.mxu0 0.0
    %1202 = vmatpush1.msra.mxu0 0.0
    %1203 = vmatprep.subr.mxu0 0.0
    %1204 = vmatpush1.msra.mxu0 0.0
    %1205 = vmatprep.subr.mxu0 0.0
    %1206 = vmatpush1.msra.mxu0 0.0
    %1207 = vmatprep.subr.mxu0 0.0
    %1208 = vmatpush1.msra.mxu0 0.0
    %1209 = vmatprep.subr.mxu0 0.0
    %1210 = vmatpush1.msra.mxu0 0.0
    %1211 = vmatprep.subr.mxu0 0.0
    %1212 = vmatpush1.msra.mxu0 0.0
    %1213 = vmatprep.subr.mxu0 0.0
    %1214 = vmatpush1.msra.mxu0 0.0
    %1215 = vmatprep.mubr.f32.mxu0 0.0
    %1216 = vmatmul.mubr.f32.gmra.mrb[0].mxu0 %v1140
    %v1217 = vpop.f32.mrb[0].mxu0
    %v1218 = vadd.f32 0.0, %v1217
    %v1219 = vpop.f32.mrb[0].mxu0
    %1220 = vmatprep.mubr.f32.mxu0 0.0
    %1221 = vmatmul.mubr.f32.gmra.mrb[0].mxu0 %v1143
    %v1222 = vpop.f32.mrb[0].mxu0
    %v1223 = vadd.f32 0.0, %v1222
    %v1224 = vpop.f32.mrb[0].mxu0
    %1225 = vmatprep.mubr.f32.mxu0 0.0
    %1226 = vmatmul.mubr.f32.gmra.mrb[0].mxu0 %v1146
    %v1227 = vpop.f32.mrb[0].mxu0
    %v1228 = vadd.f32 0.0, %v1227
    %v1229 = vpop.f32.mrb[0].mxu0
    %1230 = vmatprep.mubr.f32.mxu0 0.0
    %1231 = vmatmul.mubr.f32.gmra.mrb[0].mxu0 %v1149
    %v1232 = vpop.f32.mrb[0].mxu0
    %v1233 = vadd.f32 0.0, %v1232
    %v1234 = vpop.f32.mrb[0].mxu0
    %1235 = vdwg.mxu0
    %v1236 = vlaneseq
    %v1237 = vshrl.u32 %v1236, 7
    %v1238 = vsub.s32 0, %v1237
    %v1239 = vrot.slane %v1117, %v1238
    %v1240 = vadd.f32 %v1239, %v1218
    %v1241 = vadd.f32 %v1239, %v1223
    %v1242 = vadd.f32 %v1239, %v1228
    %v1243 = vadd.f32 %v1239, %v1233
    %v1244 = vld [vmem:[%s1 + $0x158] sm:$0xff]
    %v1245 = vld [vmem:[%s1 + $0x160] sm:$0xff]
    %v1246 = vld [vmem:[%s1 + $0x168] sm:$0xff]
    %v1247 = vld [vmem:[%s1 + $0x170] sm:$0xff]
    %vm1248 = vcmp.ge.s32.totalorder %v65, 4
    %vm1249 = vcmp.ge.s32.totalorder %v66, 4
    %vm1250 = vcmp.ge.s32.totalorder %v67, 4
    %vm1251 = vcmp.ge.s32.totalorder %v68, 4
    %v1252 = vrot.slane %v1113, 4
    %v1253 = vrot.slane %v1114, 4
    %v1254 = vrot.slane %v1115, 4
    %v1255 = vrot.slane %v1116, 4
    %vm1256 = vcmp.lt.s32.totalorder %v17, 4
    %v1257 = vsel %vm1256, %v1254, %v1255
    %v1258 = vsel %vm1256, %v1253, %v1254
    %v1259 = vsel %vm1256, %v1252, %v1253
    %v1260 = vsel %vm1256, %v1255, %v1252
    %v1261 = vsel %vm1248, %v1260, 0.0
    %v1262 = vsel %vm1249, %v1259, 0.0
    %v1263 = vsel %vm1250, %v1258, 0.0
    %v1264 = vsel %vm1251, %v1257, 0.0
    %v1266 = vsel %vm91, %v1261, 0
    %v1269 = vsel %vm91, %v1262, 0
    %v1272 = vsel %vm91, %v1263, 0
    %v1275 = vsel %vm91, %v1264, 0
    %1277 = vmatprep.subr.mxu0 0.0
    %1278 = vmatpush1.msra.mxu0 %v1244
    %1279 = vmatprep.subr.mxu0 0.0
    %1280 = vmatpush1.msra.mxu0 %v1245
    %1281 = vmatprep.subr.mxu0 0.0
    %1282 = vmatpush1.msra.mxu0 %v1246
    %1283 = vmatprep.subr.mxu0 0.0
    %1284 = vmatpush1.msra.mxu0 %v1247
    %1285 = vmatprep.subr.mxu0 0.0
    %1286 = vmatpush1.msra.mxu0 0.0
    %1287 = vmatprep.subr.mxu0 0.0
    %1288 = vmatpush1.msra.mxu0 0.0
    %1289 = vmatprep.subr.mxu0 0.0
    %1290 = vmatpush1.msra.mxu0 0.0
    %1291 = vmatprep.subr.mxu0 0.0
    %1292 = vmatpush1.msra.mxu0 0.0
    %1293 = vmatprep.subr.mxu0 0.0
    %1294 = vmatpush1.msra.mxu0 0.0
    %1295 = vmatprep.subr.mxu0 0.0
    %1296 = vmatpush1.msra.mxu0 0.0
    %1297 = vmatprep.subr.mxu0 0.0
    %1298 = vmatpush1.msra.mxu0 0.0
    %1299 = vmatprep.subr.mxu0 0.0
    %1300 = vmatpush1.msra.mxu0 0.0
    %1301 = vmatprep.subr.mxu0 0.0
    %1302 = vmatpush1.msra.mxu0 0.0
    %1303 = vmatprep.subr.mxu0 0.0
    %1304 = vmatpush1.msra.mxu0 0.0
    %1305 = vmatprep.subr.mxu0 0.0
    %1306 = vmatpush1.msra.mxu0 0.0
    %1307 = vmatprep.subr.mxu0 0.0
    %1308 = vmatpush1.msra.mxu0 0.0
    %1309 = vmatprep.subr.mxu0 0.0
    %1310 = vmatpush1.msra.mxu0 0.0
    %1311 = vmatprep.subr.mxu0 0.0
    %1312 = vmatpush1.msra.mxu0 0.0
    %1313 = vmatprep.subr.mxu0 0.0
    %1314 = vmatpush1.msra.mxu0 0.0
    %1315 = vmatprep.subr.mxu0 0.0
    %1316 = vmatpush1.msra.mxu0 0.0
    %1317 = vmatprep.subr.mxu0 0.0
    %1318 = vmatpush1.msra.mxu0 0.0
    %1319 = vmatprep.subr.mxu0 0.0
    %1320 = vmatpush1.msra.mxu0 0.0
    %1321 = vmatprep.subr.mxu0 0.0
    %1322 = vmatpush1.msra.mxu0 0.0
    %1323 = vmatprep.subr.mxu0 0.0
    %1324 = vmatpush1.msra.mxu0 0.0
    %1325 = vmatprep.subr.mxu0 0.0
    %1326 = vmatpush1.msra.mxu0 0.0
    %1327 = vmatprep.subr.mxu0 0.0
    %1328 = vmatpush1.msra.mxu0 0.0
    %1329 = vmatprep.subr.mxu0 0.0
    %1330 = vmatpush1.msra.mxu0 0.0
    %1331 = vmatprep.subr.mxu0 0.0
    %1332 = vmatpush1.msra.mxu0 0.0
    %1333 = vmatprep.subr.mxu0 0.0
    %1334 = vmatpush1.msra.mxu0 0.0
    %1335 = vmatprep.subr.mxu0 0.0
    %1336 = vmatpush1.msra.mxu0 0.0
    %1337 = vmatprep.subr.mxu0 0.0
    %1338 = vmatpush1.msra.mxu0 0.0
    %1339 = vmatprep.subr.mxu0 0.0
    %1340 = vmatpush1.msra.mxu0 0.0
    %1341 = vmatprep.mubr.f32.mxu0 0.0
    %1342 = vmatmul.mubr.f32.gmra.mrb[0].mxu0 %v1266
    %v1343 = vpop.f32.mrb[0].mxu0
    %v1344 = vadd.f32 0.0, %v1343
    %v1345 = vpop.f32.mrb[0].mxu0
    %1346 = vmatprep.mubr.f32.mxu0 0.0
    %1347 = vmatmul.mubr.f32.gmra.mrb[0].mxu0 %v1269
    %v1348 = vpop.f32.mrb[0].mxu0
    %v1349 = vadd.f32 0.0, %v1348
    %v1350 = vpop.f32.mrb[0].mxu0
    %1351 = vmatprep.mubr.f32.mxu0 0.0
    %1352 = vmatmul.mubr.f32.gmra.mrb[0].mxu0 %v1272
    %v1353 = vpop.f32.mrb[0].mxu0
    %v1354 = vadd.f32 0.0, %v1353
    %v1355 = vpop.f32.mrb[0].mxu0
    %1356 = vmatprep.mubr.f32.mxu0 0.0
    %1357 = vmatmul.mubr.f32.gmra.mrb[0].mxu0 %v1275
    %v1358 = vpop.f32.mrb[0].mxu0
    %v1359 = vadd.f32 0.0, %v1358
    %v1360 = vpop.f32.mrb[0].mxu0
    %1361 = vdwg.mxu0
    %v1362 = vadd.f32 %v1240, %v1344
    %v1363 = vadd.f32 %v1241, %v1349
    %v1364 = vadd.f32 %v1242, %v1354
    %v1365 = vadd.f32 %v1243, %v1359
    %v1366 = vld [vmem:[%s1 + $0x178] sm:$0xff]
    %v1367 = vld [vmem:[%s1 + $0x180] sm:$0xff]
    %v1368 = vld [vmem:[%s1 + $0x188] sm:$0xff]
    %v1369 = vld [vmem:[%s1 + $0x190] sm:$0xff]
    %v1370 = vrot.slane %v1113, 6
    %v1371 = vrot.slane %v1114, 6
    %v1372 = vrot.slane %v1115, 6
    %v1373 = vrot.slane %v1116, 6
    %v1374 = vsel %vm209, %v1372, %v1373
    %v1375 = vsel %vm209, %v1371, %v1372
    %v1376 = vsel %vm209, %v1370, %v1371
    %v1377 = vsel %vm209, %v1373, %v1370
    %v1378 = vsel %vm201, %v1377, 0.0
    %v1379 = vsel %vm202, %v1376, 0.0
    %v1380 = vsel %vm203, %v1375, 0.0
    %v1381 = vsel %vm204, %v1374, 0.0
    %v1383 = vsel %vm91, %v1378, 0
    %v1386 = vsel %vm91, %v1379, 0
    %v1389 = vsel %vm91, %v1380, 0
    %v1392 = vsel %vm91, %v1381, 0
    %1394 = vmatprep.subr.mxu0 0.0
    %1395 = vmatpush1.msra.mxu0 %v1366
    %1396 = vmatprep.subr.mxu0 0.0
    %1397 = vmatpush1.msra.mxu0 %v1367
    %1398 = vmatprep.subr.mxu0 0.0
    %1399 = vmatpush1.msra.mxu0 %v1368
    %1400 = vmatprep.subr.mxu0 0.0
    %1401 = vmatpush1.msra.mxu0 %v1369
    %1402 = vmatprep.subr.mxu0 0.0
    %1403 = vmatpush1.msra.mxu0 0.0
    %1404 = vmatprep.subr.mxu0 0.0
    %1405 = vmatpush1.msra.mxu0 0.0
    %1406 = vmatprep.subr.mxu0 0.0
    %1407 = vmatpush1.msra.mxu0 0.0
    %1408 = vmatprep.subr.mxu0 0.0
    %1409 = vmatpush1.msra.mxu0 0.0
    %1410 = vmatprep.subr.mxu0 0.0
    %1411 = vmatpush1.msra.mxu0 0.0
    %1412 = vmatprep.subr.mxu0 0.0
    %1413 = vmatpush1.msra.mxu0 0.0
    %1414 = vmatprep.subr.mxu0 0.0
    %1415 = vmatpush1.msra.mxu0 0.0
    %1416 = vmatprep.subr.mxu0 0.0
    %1417 = vmatpush1.msra.mxu0 0.0
    %1418 = vmatprep.subr.mxu0 0.0
    %1419 = vmatpush1.msra.mxu0 0.0
    %1420 = vmatprep.subr.mxu0 0.0
    %1421 = vmatpush1.msra.mxu0 0.0
    %1422 = vmatprep.subr.mxu0 0.0
    %1423 = vmatpush1.msra.mxu0 0.0
    %1424 = vmatprep.subr.mxu0 0.0
    %1425 = vmatpush1.msra.mxu0 0.0
    %1426 = vmatprep.subr.mxu0 0.0
    %1427 = vmatpush1.msra.mxu0 0.0
    %1428 = vmatprep.subr.mxu0 0.0
    %1429 = vmatpush1.msra.mxu0 0.0
    %1430 = vmatprep.subr.mxu0 0.0
    %1431 = vmatpush1.msra.mxu0 0.0
    %1432 = vmatprep.subr.mxu0 0.0
    %1433 = vmatpush1.msra.mxu0 0.0
    %1434 = vmatprep.subr.mxu0 0.0
    %1435 = vmatpush1.msra.mxu0 0.0
    %1436 = vmatprep.subr.mxu0 0.0
    %1437 = vmatpush1.msra.mxu0 0.0
    %1438 = vmatprep.subr.mxu0 0.0
    %1439 = vmatpush1.msra.mxu0 0.0
    %1440 = vmatprep.subr.mxu0 0.0
    %1441 = vmatpush1.msra.mxu0 0.0
    %1442 = vmatprep.subr.mxu0 0.0
    %1443 = vmatpush1.msra.mxu0 0.0
    %1444 = vmatprep.subr.mxu0 0.0
    %1445 = vmatpush1.msra.mxu0 0.0
    %1446 = vmatprep.subr.mxu0 0.0
    %1447 = vmatpush1.msra.mxu0 0.0
    %1448 = vmatprep.subr.mxu0 0.0
    %1449 = vmatpush1.msra.mxu0 0.0
    %1450 = vmatprep.subr.mxu0 0.0
    %1451 = vmatpush1.msra.mxu0 0.0
    %1452 = vmatprep.subr.mxu0 0.0
    %1453 = vmatpush1.msra.mxu0 0.0
    %1454 = vmatprep.subr.mxu0 0.0
    %1455 = vmatpush1.msra.mxu0 0.0
    %1456 = vmatprep.subr.mxu0 0.0
    %1457 = vmatpush1.msra.mxu0 0.0
    %1458 = vmatprep.mubr.f32.mxu0 0.0
    %1459 = vmatmul.mubr.f32.gmra.mrb[0].mxu0 %v1383
    %v1460 = vpop.f32.mrb[0].mxu0
    %v1461 = vadd.f32 0.0, %v1460
    %v1462 = vpop.f32.mrb[0].mxu0
    %1463 = vmatprep.mubr.f32.mxu0 0.0
    %1464 = vmatmul.mubr.f32.gmra.mrb[0].mxu0 %v1386
    %v1465 = vpop.f32.mrb[0].mxu0
    %v1466 = vadd.f32 0.0, %v1465
    %v1467 = vpop.f32.mrb[0].mxu0
    %1468 = vmatprep.mubr.f32.mxu0 0.0
    %1469 = vmatmul.mubr.f32.gmra.mrb[0].mxu0 %v1389
    %v1470 = vpop.f32.mrb[0].mxu0
    %v1471 = vadd.f32 0.0, %v1470
    %v1472 = vpop.f32.mrb[0].mxu0
    %1473 = vmatprep.mubr.f32.mxu0 0.0
    %1474 = vmatmul.mubr.f32.gmra.mrb[0].mxu0 %v1392
    %v1475 = vpop.f32.mrb[0].mxu0
    %v1476 = vadd.f32 0.0, %v1475
    %v1477 = vpop.f32.mrb[0].mxu0
    %1478 = vdwg.mxu0
    %v1479 = vadd.f32 %v1362, %v1461
    %v1480 = vadd.f32 %v1363, %v1466
    %v1481 = vadd.f32 %v1364, %v1471
    %v1482 = vadd.f32 %v1365, %v1476
    %v1483 = vld [vmem:[%s1 + $0x198] sm:$0xff]
    %v1484 = vld [vmem:[%s1 + $0x1a0] sm:$0xff]
    %v1485 = vld [vmem:[%s1 + $0x1a8] sm:$0xff]
    %v1486 = vld [vmem:[%s1 + $0x1b0] sm:$0xff]
    %v1488 = vsel %vm91, %v1113, 0
    %v1491 = vsel %vm91, %v1114, 0
    %v1494 = vsel %vm91, %v1115, 0
    %v1497 = vsel %vm91, %v1116, 0
    %1499 = vmatprep.subr.mxu0 0.0
    %1500 = vmatpush1.msra.mxu0 %v1483
    %1501 = vmatprep.subr.mxu0 0.0
    %1502 = vmatpush1.msra.mxu0 %v1484
    %1503 = vmatprep.subr.mxu0 0.0
    %1504 = vmatpush1.msra.mxu0 %v1485
    %1505 = vmatprep.subr.mxu0 0.0
    %1506 = vmatpush1.msra.mxu0 %v1486
    %1507 = vmatprep.subr.mxu0 0.0
    %1508 = vmatpush1.msra.mxu0 0.0
    %1509 = vmatprep.subr.mxu0 0.0
    %1510 = vmatpush1.msra.mxu0 0.0
    %1511 = vmatprep.subr.mxu0 0.0
    %1512 = vmatpush1.msra.mxu0 0.0
    %1513 = vmatprep.subr.mxu0 0.0
    %1514 = vmatpush1.msra.mxu0 0.0
    %1515 = vmatprep.subr.mxu0 0.0
    %1516 = vmatpush1.msra.mxu0 0.0
    %1517 = vmatprep.subr.mxu0 0.0
    %1518 = vmatpush1.msra.mxu0 0.0
    %1519 = vmatprep.subr.mxu0 0.0
    %1520 = vmatpush1.msra.mxu0 0.0
    %1521 = vmatprep.subr.mxu0 0.0
    %1522 = vmatpush1.msra.mxu0 0.0
    %1523 = vmatprep.subr.mxu0 0.0
    %1524 = vmatpush1.msra.mxu0 0.0
    %1525 = vmatprep.subr.mxu0 0.0
    %1526 = vmatpush1.msra.mxu0 0.0
    %1527 = vmatprep.subr.mxu0 0.0
    %1528 = vmatpush1.msra.mxu0 0.0
    %1529 = vmatprep.subr.mxu0 0.0
    %1530 = vmatpush1.msra.mxu0 0.0
    %1531 = vmatprep.subr.mxu0 0.0
    %1532 = vmatpush1.msra.mxu0 0.0
    %1533 = vmatprep.subr.mxu0 0.0
    %1534 = vmatpush1.msra.mxu0 0.0
    %1535 = vmatprep.subr.mxu0 0.0
    %1536 = vmatpush1.msra.mxu0 0.0
    %1537 = vmatprep.subr.mxu0 0.0
    %1538 = vmatpush1.msra.mxu0 0.0
    %1539 = vmatprep.subr.mxu0 0.0
    %1540 = vmatpush1.msra.mxu0 0.0
    %1541 = vmatprep.subr.mxu0 0.0
    %1542 = vmatpush1.msra.mxu0 0.0
    %1543 = vmatprep.subr.mxu0 0.0
    %1544 = vmatpush1.msra.mxu0 0.0
    %1545 = vmatprep.subr.mxu0 0.0
    %1546 = vmatpush1.msra.mxu0 0.0
    %1547 = vmatprep.subr.mxu0 0.0
    %1548 = vmatpush1.msra.mxu0 0.0
    %1549 = vmatprep.subr.mxu0 0.0
    %1550 = vmatpush1.msra.mxu0 0.0
    %1551 = vmatprep.subr.mxu0 0.0
    %1552 = vmatpush1.msra.mxu0 0.0
    %1553 = vmatprep.subr.mxu0 0.0
    %1554 = vmatpush1.msra.mxu0 0.0
    %1555 = vmatprep.subr.mxu0 0.0
    %1556 = vmatpush1.msra.mxu0 0.0
    %1557 = vmatprep.subr.mxu0 0.0
    %1558 = vmatpush1.msra.mxu0 0.0
    %1559 = vmatprep.subr.mxu0 0.0
    %1560 = vmatpush1.msra.mxu0 0.0
    %1561 = vmatprep.subr.mxu0 0.0
    %1562 = vmatpush1.msra.mxu0 0.0
    %1563 = vmatprep.mubr.f32.mxu0 0.0
    %1564 = vmatmul.mubr.f32.gmra.mrb[0].mxu0 %v1488
    %v1565 = vpop.f32.mrb[0].mxu0
    %v1566 = vadd.f32 0.0, %v1565
    %v1567 = vpop.f32.mrb[0].mxu0
    %1568 = vmatprep.mubr.f32.mxu0 0.0
    %1569 = vmatmul.mubr.f32.gmra.mrb[0].mxu0 %v1491
    %v1570 = vpop.f32.mrb[0].mxu0
    %v1571 = vadd.f32 0.0, %v1570
    %v1572 = vpop.f32.mrb[0].mxu0
    %1573 = vmatprep.mubr.f32.mxu0 0.0
    %1574 = vmatmul.mubr.f32.gmra.mrb[0].mxu0 %v1494
    %v1575 = vpop.f32.mrb[0].mxu0
    %v1576 = vadd.f32 0.0, %v1575
    %v1577 = vpop.f32.mrb[0].mxu0
    %1578 = vmatprep.mubr.f32.mxu0 0.0
    %1579 = vmatmul.mubr.f32.gmra.mrb[0].mxu0 %v1497
    %v1580 = vpop.f32.mrb[0].mxu0
    %v1581 = vadd.f32 0.0, %v1580
    %v1582 = vpop.f32.mrb[0].mxu0
    %1583 = vdwg.mxu0
    %v1584 = vadd.f32 %v1479, %v1566
    %v1585 = vadd.f32 %v1480, %v1571
    %v1586 = vadd.f32 %v1481, %v1576
    %v1587 = vadd.f32 %v1482, %v1581
    %v1588 = vmax.f32 %v1584, 0.0
    %v1589 = vmax.f32 %v1585, 0.0
    %v1590 = vmax.f32 %v1586, 0.0
    %v1591 = vmax.f32 %v1587, 0.0
    %v1592 = vld [vmem:[%s1 + $0x240] sm:$0x1]
    %v1593 = vld [vmem:[%s1 + $0x1c0] sm:$0xff]
    %v1594 = vld [vmem:[%s1 + $0x1c8] sm:$0xff]
    %v1595 = vld [vmem:[%s1 + $0x1d0] sm:$0xff]
    %v1596 = vld [vmem:[%s1 + $0x1d8] sm:$0xff]
    %v1597 = vrot.slane %v1588, 2
    %v1598 = vrot.slane %v1589, 2
    %v1599 = vrot.slane %v1590, 2
    %v1600 = vrot.slane %v1591, 2
    %v1601 = vsel %vm1130, %v1599, %v1600
    %v1602 = vsel %vm1130, %v1598, %v1599
    %v1603 = vsel %vm1130, %v1597, %v1598
    %v1604 = vsel %vm1130, %v1600, %v1597
    %v1605 = vsel %vm1122, %v1604, 0.0
    %v1606 = vsel %vm1123, %v1603, 0.0
    %v1607 = vsel %vm1124, %v1602, 0.0
    %v1608 = vsel %vm1125, %v1601, 0.0
    %v1610 = vsel %vm91, %v1605, 0
    %v1613 = vsel %vm91, %v1606, 0
    %v1616 = vsel %vm91, %v1607, 0
    %v1619 = vsel %vm91, %v1608, 0
    %1621 = vmatprep.subr.mxu0 0.0
    %1622 = vmatpush1.msra.mxu0 %v1593
    %1623 = vmatprep.subr.mxu0 0.0
    %1624 = vmatpush1.msra.mxu0 %v1594
    %1625 = vmatprep.subr.mxu0 0.0
    %1626 = vmatpush1.msra.mxu0 %v1595
    %1627 = vmatprep.subr.mxu0 0.0
    %1628 = vmatpush1.msra.mxu0 %v1596
    %1629 = vmatprep.subr.mxu0 0.0
    %1630 = vmatpush1.msra.mxu0 0.0
    %1631 = vmatprep.subr.mxu0 0.0
    %1632 = vmatpush1.msra.mxu0 0.0
    %1633 = vmatprep.subr.mxu0 0.0
    %1634 = vmatpush1.msra.mxu0 0.0
    %1635 = vmatprep.subr.mxu0 0.0
    %1636 = vmatpush1.msra.mxu0 0.0
    %1637 = vmatprep.subr.mxu0 0.0
    %1638 = vmatpush1.msra.mxu0 0.0
    %1639 = vmatprep.subr.mxu0 0.0
    %1640 = vmatpush1.msra.mxu0 0.0
    %1641 = vmatprep.subr.mxu0 0.0
    %1642 = vmatpush1.msra.mxu0 0.0
    %1643 = vmatprep.subr.mxu0 0.0
    %1644 = vmatpush1.msra.mxu0 0.0
    %1645 = vmatprep.subr.mxu0 0.0
    %1646 = vmatpush1.msra.mxu0 0.0
    %1647 = vmatprep.subr.mxu0 0.0
    %1648 = vmatpush1.msra.mxu0 0.0
    %1649 = vmatprep.subr.mxu0 0.0
    %1650 = vmatpush1.msra.mxu0 0.0
    %1651 = vmatprep.subr.mxu0 0.0
    %1652 = vmatpush1.msra.mxu0 0.0
    %1653 = vmatprep.subr.mxu0 0.0
    %1654 = vmatpush1.msra.mxu0 0.0
    %1655 = vmatprep.subr.mxu0 0.0
    %1656 = vmatpush1.msra.mxu0 0.0
    %1657 = vmatprep.subr.mxu0 0.0
    %1658 = vmatpush1.msra.mxu0 0.0
    %1659 = vmatprep.subr.mxu0 0.0
    %1660 = vmatpush1.msra.mxu0 0.0
    %1661 = vmatprep.subr.mxu0 0.0
    %1662 = vmatpush1.msra.mxu0 0.0
    %1663 = vmatprep.subr.mxu0 0.0
    %1664 = vmatpush1.msra.mxu0 0.0
    %1665 = vmatprep.subr.mxu0 0.0
    %1666 = vmatpush1.msra.mxu0 0.0
    %1667 = vmatprep.subr.mxu0 0.0
    %1668 = vmatpush1.msra.mxu0 0.0
    %1669 = vmatprep.subr.mxu0 0.0
    %1670 = vmatpush1.msra.mxu0 0.0
    %1671 = vmatprep.subr.mxu0 0.0
    %1672 = vmatpush1.msra.mxu0 0.0
    %1673 = vmatprep.subr.mxu0 0.0
    %1674 = vmatpush1.msra.mxu0 0.0
    %1675 = vmatprep.subr.mxu0 0.0
    %1676 = vmatpush1.msra.mxu0 0.0
    %1677 = vmatprep.subr.mxu0 0.0
    %1678 = vmatpush1.msra.mxu0 0.0
    %1679 = vmatprep.subr.mxu0 0.0
    %1680 = vmatpush1.msra.mxu0 0.0
    %1681 = vmatprep.subr.mxu0 0.0
    %1682 = vmatpush1.msra.mxu0 0.0
    %1683 = vmatprep.subr.mxu0 0.0
    %1684 = vmatpush1.msra.mxu0 0.0
    %1685 = vmatprep.mubr.f32.mxu0 0.0
    %1686 = vmatmul.mubr.f32.gmra.mrb[0].mxu0 %v1610
    %v1687 = vpop.f32.mrb[0].mxu0
    %v1688 = vadd.f32 0.0, %v1687
    %v1689 = vpop.f32.mrb[0].mxu0
    %1690 = vmatprep.mubr.f32.mxu0 0.0
    %1691 = vmatmul.mubr.f32.gmra.mrb[0].mxu0 %v1613
    %v1692 = vpop.f32.mrb[0].mxu0
    %v1693 = vadd.f32 0.0, %v1692
    %v1694 = vpop.f32.mrb[0].mxu0
    %1695 = vmatprep.mubr.f32.mxu0 0.0
    %1696 = vmatmul.mubr.f32.gmra.mrb[0].mxu0 %v1616
    %v1697 = vpop.f32.mrb[0].mxu0
    %v1698 = vadd.f32 0.0, %v1697
    %v1699 = vpop.f32.mrb[0].mxu0
    %1700 = vmatprep.mubr.f32.mxu0 0.0
    %1701 = vmatmul.mubr.f32.gmra.mrb[0].mxu0 %v1619
    %v1702 = vpop.f32.mrb[0].mxu0
    %v1703 = vadd.f32 0.0, %v1702
    %v1704 = vpop.f32.mrb[0].mxu0
    %1705 = vdwg.mxu0
    %v1706 = vlaneseq
    %v1707 = vshrl.u32 %v1706, 7
    %v1708 = vsub.s32 0, %v1707
    %v1709 = vrot.slane %v1592, %v1708
    %v1710 = vadd.f32 %v1709, %v1688
    %v1711 = vadd.f32 %v1709, %v1693
    %v1712 = vadd.f32 %v1709, %v1698
    %v1713 = vadd.f32 %v1709, %v1703
    %v1714 = vld [vmem:[%s1 + $0x1e0] sm:$0xff]
    %v1715 = vld [vmem:[%s1 + $0x1e8] sm:$0xff]
    %v1716 = vld [vmem:[%s1 + $0x1f0] sm:$0xff]
    %v1717 = vld [vmem:[%s1 + $0x1f8] sm:$0xff]
    %v1718 = vrot.slane %v1588, 4
    %v1719 = vrot.slane %v1589, 4
    %v1720 = vrot.slane %v1590, 4
    %v1721 = vrot.slane %v1591, 4
    %v1722 = vsel %vm1256, %v1720, %v1721
    %v1723 = vsel %vm1256, %v1719, %v1720
    %v1724 = vsel %vm1256, %v1718, %v1719
    %v1725 = vsel %vm1256, %v1721, %v1718
    %v1726 = vsel %vm1248, %v1725, 0.0
    %v1727 = vsel %vm1249, %v1724, 0.0
    %v1728 = vsel %vm1250, %v1723, 0.0
    %v1729 = vsel %vm1251, %v1722, 0.0
    %v1731 = vsel %vm91, %v1726, 0
    %v1734 = vsel %vm91, %v1727, 0
    %v1737 = vsel %vm91, %v1728, 0
    %v1740 = vsel %vm91, %v1729, 0
    %1742 = vmatprep.subr.mxu0 0.0
    %1743 = vmatpush1.msra.mxu0 %v1714
    %1744 = vmatprep.subr.mxu0 0.0
    %1745 = vmatpush1.msra.mxu0 %v1715
    %1746 = vmatprep.subr.mxu0 0.0
    %1747 = vmatpush1.msra.mxu0 %v1716
    %1748 = vmatprep.subr.mxu0 0.0
    %1749 = vmatpush1.msra.mxu0 %v1717
    %1750 = vmatprep.subr.mxu0 0.0
    %1751 = vmatpush1.msra.mxu0 0.0
    %1752 = vmatprep.subr.mxu0 0.0
    %1753 = vmatpush1.msra.mxu0 0.0
    %1754 = vmatprep.subr.mxu0 0.0
    %1755 = vmatpush1.msra.mxu0 0.0
    %1756 = vmatprep.subr.mxu0 0.0
    %1757 = vmatpush1.msra.mxu0 0.0
    %1758 = vmatprep.subr.mxu0 0.0
    %1759 = vmatpush1.msra.mxu0 0.0
    %1760 = vmatprep.subr.mxu0 0.0
    %1761 = vmatpush1.msra.mxu0 0.0
    %1762 = vmatprep.subr.mxu0 0.0
    %1763 = vmatpush1.msra.mxu0 0.0
    %1764 = vmatprep.subr.mxu0 0.0
    %1765 = vmatpush1.msra.mxu0 0.0
    %1766 = vmatprep.subr.mxu0 0.0
    %1767 = vmatpush1.msra.mxu0 0.0
    %1768 = vmatprep.subr.mxu0 0.0
    %1769 = vmatpush1.msra.mxu0 0.0
    %1770 = vmatprep.subr.mxu0 0.0
    %1771 = vmatpush1.msra.mxu0 0.0
    %1772 = vmatprep.subr.mxu0 0.0
    %1773 = vmatpush1.msra.mxu0 0.0
    %1774 = vmatprep.subr.mxu0 0.0
    %1775 = vmatpush1.msra.mxu0 0.0
    %1776 = vmatprep.subr.mxu0 0.0
    %1777 = vmatpush1.msra.mxu0 0.0
    %1778 = vmatprep.subr.mxu0 0.0
    %1779 = vmatpush1.msra.mxu0 0.0
    %1780 = vmatprep.subr.mxu0 0.0
    %1781 = vmatpush1.msra.mxu0 0.0
    %1782 = vmatprep.subr.mxu0 0.0
    %1783 = vmatpush1.msra.mxu0 0.0
    %1784 = vmatprep.subr.mxu0 0.0
    %1785 = vmatpush1.msra.mxu0 0.0
    %1786 = vmatprep.subr.mxu0 0.0
    %1787 = vmatpush1.msra.mxu0 0.0
    %1788 = vmatprep.subr.mxu0 0.0
    %1789 = vmatpush1.msra.mxu0 0.0
    %1790 = vmatprep.subr.mxu0 0.0
    %1791 = vmatpush1.msra.mxu0 0.0
    %1792 = vmatprep.subr.mxu0 0.0
    %1793 = vmatpush1.msra.mxu0 0.0
    %1794 = vmatprep.subr.mxu0 0.0
    %1795 = vmatpush1.msra.mxu0 0.0
    %1796 = vmatprep.subr.mxu0 0.0
    %1797 = vmatpush1.msra.mxu0 0.0
    %1798 = vmatprep.subr.mxu0 0.0
    %1799 = vmatpush1.msra.mxu0 0.0
    %1800 = vmatprep.subr.mxu0 0.0
    %1801 = vmatpush1.msra.mxu0 0.0
    %1802 = vmatprep.subr.mxu0 0.0
    %1803 = vmatpush1.msra.mxu0 0.0
    %1804 = vmatprep.subr.mxu0 0.0
    %1805 = vmatpush1.msra.mxu0 0.0
    %1806 = vmatprep.mubr.f32.mxu0 0.0
    %1807 = vmatmul.mubr.f32.gmra.mrb[0].mxu0 %v1731
    %v1808 = vpop.f32.mrb[0].mxu0
    %v1809 = vadd.f32 0.0, %v1808
    %v1810 = vpop.f32.mrb[0].mxu0
    %1811 = vmatprep.mubr.f32.mxu0 0.0
    %1812 = vmatmul.mubr.f32.gmra.mrb[0].mxu0 %v1734
    %v1813 = vpop.f32.mrb[0].mxu0
    %v1814 = vadd.f32 0.0, %v1813
    %v1815 = vpop.f32.mrb[0].mxu0
    %1816 = vmatprep.mubr.f32.mxu0 0.0
    %1817 = vmatmul.mubr.f32.gmra.mrb[0].mxu0 %v1737
    %v1818 = vpop.f32.mrb[0].mxu0
    %v1819 = vadd.f32 0.0, %v1818
    %v1820 = vpop.f32.mrb[0].mxu0
    %1821 = vmatprep.mubr.f32.mxu0 0.0
    %1822 = vmatmul.mubr.f32.gmra.mrb[0].mxu0 %v1740
    %v1823 = vpop.f32.mrb[0].mxu0
    %v1824 = vadd.f32 0.0, %v1823
    %v1825 = vpop.f32.mrb[0].mxu0
    %1826 = vdwg.mxu0
    %v1827 = vadd.f32 %v1710, %v1809
    %v1828 = vadd.f32 %v1711, %v1814
    %v1829 = vadd.f32 %v1712, %v1819
    %v1830 = vadd.f32 %v1713, %v1824
    %v1831 = vld [vmem:[%s1 + $0x200] sm:$0xff]
    %v1832 = vld [vmem:[%s1 + $0x208] sm:$0xff]
    %v1833 = vld [vmem:[%s1 + $0x210] sm:$0xff]
    %v1834 = vld [vmem:[%s1 + $0x218] sm:$0xff]
    %v1835 = vrot.slane %v1588, 6
    %v1836 = vrot.slane %v1589, 6
    %v1837 = vrot.slane %v1590, 6
    %v1838 = vrot.slane %v1591, 6
    %v1839 = vsel %vm209, %v1837, %v1838
    %v1840 = vsel %vm209, %v1836, %v1837
    %v1841 = vsel %vm209, %v1835, %v1836
    %v1842 = vsel %vm209, %v1838, %v1835
    %v1843 = vsel %vm201, %v1842, 0.0
    %v1844 = vsel %vm202, %v1841, 0.0
    %v1845 = vsel %vm203, %v1840, 0.0
    %v1846 = vsel %vm204, %v1839, 0.0
    %v1848 = vsel %vm91, %v1843, 0
    %v1851 = vsel %vm91, %v1844, 0
    %v1854 = vsel %vm91, %v1845, 0
    %v1857 = vsel %vm91, %v1846, 0
    %1859 = vmatprep.subr.mxu0 0.0
    %1860 = vmatpush1.msra.mxu0 %v1831
    %1861 = vmatprep.subr.mxu0 0.0
    %1862 = vmatpush1.msra.mxu0 %v1832
    %1863 = vmatprep.subr.mxu0 0.0
    %1864 = vmatpush1.msra.mxu0 %v1833
    %1865 = vmatprep.subr.mxu0 0.0
    %1866 = vmatpush1.msra.mxu0 %v1834
    %1867 = vmatprep.subr.mxu0 0.0
    %1868 = vmatpush1.msra.mxu0 0.0
    %1869 = vmatprep.subr.mxu0 0.0
    %1870 = vmatpush1.msra.mxu0 0.0
    %1871 = vmatprep.subr.mxu0 0.0
    %1872 = vmatpush1.msra.mxu0 0.0
    %1873 = vmatprep.subr.mxu0 0.0
    %1874 = vmatpush1.msra.mxu0 0.0
    %1875 = vmatprep.subr.mxu0 0.0
    %1876 = vmatpush1.msra.mxu0 0.0
    %1877 = vmatprep.subr.mxu0 0.0
    %1878 = vmatpush1.msra.mxu0 0.0
    %1879 = vmatprep.subr.mxu0 0.0
    %1880 = vmatpush1.msra.mxu0 0.0
    %1881 = vmatprep.subr.mxu0 0.0
    %1882 = vmatpush1.msra.mxu0 0.0
    %1883 = vmatprep.subr.mxu0 0.0
    %1884 = vmatpush1.msra.mxu0 0.0
    %1885 = vmatprep.subr.mxu0 0.0
    %1886 = vmatpush1.msra.mxu0 0.0
    %1887 = vmatprep.subr.mxu0 0.0
    %1888 = vmatpush1.msra.mxu0 0.0
    %1889 = vmatprep.subr.mxu0 0.0
    %1890 = vmatpush1.msra.mxu0 0.0
    %1891 = vmatprep.subr.mxu0 0.0
    %1892 = vmatpush1.msra.mxu0 0.0
    %1893 = vmatprep.subr.mxu0 0.0
    %1894 = vmatpush1.msra.mxu0 0.0
    %1895 = vmatprep.subr.mxu0 0.0
    %1896 = vmatpush1.msra.mxu0 0.0
    %1897 = vmatprep.subr.mxu0 0.0
    %1898 = vmatpush1.msra.mxu0 0.0
    %1899 = vmatprep.subr.mxu0 0.0
    %1900 = vmatpush1.msra.mxu0 0.0
    %1901 = vmatprep.subr.mxu0 0.0
    %1902 = vmatpush1.msra.mxu0 0.0
    %1903 = vmatprep.subr.mxu0 0.0
    %1904 = vmatpush1.msra.mxu0 0.0
    %1905 = vmatprep.subr.mxu0 0.0
    %1906 = vmatpush1.msra.mxu0 0.0
    %1907 = vmatprep.subr.mxu0 0.0
    %1908 = vmatpush1.msra.mxu0 0.0
    %1909 = vmatprep.subr.mxu0 0.0
    %1910 = vmatpush1.msra.mxu0 0.0
    %1911 = vmatprep.subr.mxu0 0.0
    %1912 = vmatpush1.msra.mxu0 0.0
    %1913 = vmatprep.subr.mxu0 0.0
    %1914 = vmatpush1.msra.mxu0 0.0
    %1915 = vmatprep.subr.mxu0 0.0
    %1916 = vmatpush1.msra.mxu0 0.0
    %1917 = vmatprep.subr.mxu0 0.0
    %1918 = vmatpush1.msra.mxu0 0.0
    %1919 = vmatprep.subr.mxu0 0.0
    %1920 = vmatpush1.msra.mxu0 0.0
    %1921 = vmatprep.subr.mxu0 0.0
    %1922 = vmatpush1.msra.mxu0 0.0
    %1923 = vmatprep.mubr.f32.mxu0 0.0
    %1924 = vmatmul.mubr.f32.gmra.mrb[0].mxu0 %v1848
    %v1925 = vpop.f32.mrb[0].mxu0
    %v1926 = vadd.f32 0.0, %v1925
    %v1927 = vpop.f32.mrb[0].mxu0
    %1928 = vmatprep.mubr.f32.mxu0 0.0
    %1929 = vmatmul.mubr.f32.gmra.mrb[0].mxu0 %v1851
    %v1930 = vpop.f32.mrb[0].mxu0
    %v1931 = vadd.f32 0.0, %v1930
    %v1932 = vpop.f32.mrb[0].mxu0
    %1933 = vmatprep.mubr.f32.mxu0 0.0
    %1934 = vmatmul.mubr.f32.gmra.mrb[0].mxu0 %v1854
    %v1935 = vpop.f32.mrb[0].mxu0
    %v1936 = vadd.f32 0.0, %v1935
    %v1937 = vpop.f32.mrb[0].mxu0
    %1938 = vmatprep.mubr.f32.mxu0 0.0
    %1939 = vmatmul.mubr.f32.gmra.mrb[0].mxu0 %v1857
    %v1940 = vpop.f32.mrb[0].mxu0
    %v1941 = vadd.f32 0.0, %v1940
    %v1942 = vpop.f32.mrb[0].mxu0
    %1943 = vdwg.mxu0
    %v1944 = vadd.f32 %v1827, %v1926
    %v1945 = vadd.f32 %v1828, %v1931
    %v1946 = vadd.f32 %v1829, %v1936
    %v1947 = vadd.f32 %v1830, %v1941
    %v1948 = vld [vmem:[%s1 + $0x220] sm:$0xff]
    %v1949 = vld [vmem:[%s1 + $0x228] sm:$0xff]
    %v1950 = vld [vmem:[%s1 + $0x230] sm:$0xff]
    %v1951 = vld [vmem:[%s1 + $0x238] sm:$0xff]
    %v1953 = vsel %vm91, %v1588, 0
    %v1956 = vsel %vm91, %v1589, 0
    %v1959 = vsel %vm91, %v1590, 0
    %v1962 = vsel %vm91, %v1591, 0
    %1964 = vmatprep.subr.mxu0 0.0
    %1965 = vmatpush1.msra.mxu0 %v1948
    %1966 = vmatprep.subr.mxu0 0.0
    %1967 = vmatpush1.msra.mxu0 %v1949
    %1968 = vmatprep.subr.mxu0 0.0
    %1969 = vmatpush1.msra.mxu0 %v1950
    %1970 = vmatprep.subr.mxu0 0.0
    %1971 = vmatpush1.msra.mxu0 %v1951
    %1972 = vmatprep.subr.mxu0 0.0
    %1973 = vmatpush1.msra.mxu0 0.0
    %1974 = vmatprep.subr.mxu0 0.0
    %1975 = vmatpush1.msra.mxu0 0.0
    %1976 = vmatprep.subr.mxu0 0.0
    %1977 = vmatpush1.msra.mxu0 0.0
    %1978 = vmatprep.subr.mxu0 0.0
    %1979 = vmatpush1.msra.mxu0 0.0
    %1980 = vmatprep.subr.mxu0 0.0
    %1981 = vmatpush1.msra.mxu0 0.0
    %1982 = vmatprep.subr.mxu0 0.0
    %1983 = vmatpush1.msra.mxu0 0.0
    %1984 = vmatprep.subr.mxu0 0.0
    %1985 = vmatpush1.msra.mxu0 0.0
    %1986 = vmatprep.subr.mxu0 0.0
    %1987 = vmatpush1.msra.mxu0 0.0
    %1988 = vmatprep.subr.mxu0 0.0
    %1989 = vmatpush1.msra.mxu0 0.0
    %1990 = vmatprep.subr.mxu0 0.0
    %1991 = vmatpush1.msra.mxu0 0.0
    %1992 = vmatprep.subr.mxu0 0.0
    %1993 = vmatpush1.msra.mxu0 0.0
    %1994 = vmatprep.subr.mxu0 0.0
    %1995 = vmatpush1.msra.mxu0 0.0
    %1996 = vmatprep.subr.mxu0 0.0
    %1997 = vmatpush1.msra.mxu0 0.0
    %1998 = vmatprep.subr.mxu0 0.0
    %1999 = vmatpush1.msra.mxu0 0.0
    %2000 = vmatprep.subr.mxu0 0.0
    %2001 = vmatpush1.msra.mxu0 0.0
    %2002 = vmatprep.subr.mxu0 0.0
    %2003 = vmatpush1.msra.mxu0 0.0
    %2004 = vmatprep.subr.mxu0 0.0
    %2005 = vmatpush1.msra.mxu0 0.0
    %2006 = vmatprep.subr.mxu0 0.0
    %2007 = vmatpush1.msra.mxu0 0.0
    %2008 = vmatprep.subr.mxu0 0.0
    %2009 = vmatpush1.msra.mxu0 0.0
    %2010 = vmatprep.subr.mxu0 0.0
    %2011 = vmatpush1.msra.mxu0 0.0
    %2012 = vmatprep.subr.mxu0 0.0
    %2013 = vmatpush1.msra.mxu0 0.0
    %2014 = vmatprep.subr.mxu0 0.0
    %2015 = vmatpush1.msra.mxu0 0.0
    %2016 = vmatprep.subr.mxu0 0.0
    %2017 = vmatpush1.msra.mxu0 0.0
    %2018 = vmatprep.subr.mxu0 0.0
    %2019 = vmatpush1.msra.mxu0 0.0
    %2020 = vmatprep.subr.mxu0 0.0
    %2021 = vmatpush1.msra.mxu0 0.0
    %2022 = vmatprep.subr.mxu0 0.0
    %2023 = vmatpush1.msra.mxu0 0.0
    %2024 = vmatprep.subr.mxu0 0.0
    %2025 = vmatpush1.msra.mxu0 0.0
    %2026 = vmatprep.subr.mxu0 0.0
    %2027 = vmatpush1.msra.mxu0 0.0
    %2028 = vmatprep.mubr.f32.mxu0 0.0
    %2029 = vmatmul.mubr.f32.gmra.mrb[0].mxu0 %v1953
    %v2030 = vpop.f32.mrb[0].mxu0
    %v2031 = vadd.f32 0.0, %v2030
    %v2032 = vpop.f32.mrb[0].mxu0
    %2033 = vmatprep.mubr.f32.mxu0 0.0
    %2034 = vmatmul.mubr.f32.gmra.mrb[0].mxu0 %v1956
    %v2035 = vpop.f32.mrb[0].mxu0
    %v2036 = vadd.f32 0.0, %v2035
    %v2037 = vpop.f32.mrb[0].mxu0
    %2038 = vmatprep.mubr.f32.mxu0 0.0
    %2039 = vmatmul.mubr.f32.gmra.mrb[0].mxu0 %v1959
    %v2040 = vpop.f32.mrb[0].mxu0
    %v2041 = vadd.f32 0.0, %v2040
    %v2042 = vpop.f32.mrb[0].mxu0
    %2043 = vmatprep.mubr.f32.mxu0 0.0
    %2044 = vmatmul.mubr.f32.gmra.mrb[0].mxu0 %v1962
    %v2045 = vpop.f32.mrb[0].mxu0
    %v2046 = vadd.f32 0.0, %v2045
    %v2047 = vpop.f32.mrb[0].mxu0
    %2048 = vdwg.mxu0
    %v2049 = vadd.f32 %v1944, %v2031
    %v2050 = vadd.f32 %v1945, %v2036
    %v2051 = vadd.f32 %v1946, %v2041
    %v2052 = vadd.f32 %v1947, %v2046
    %v2053 = vmax.f32 %v2049, 0.0
    %v2054 = vmax.f32 %v2050, 0.0
    %v2055 = vmax.f32 %v2051, 0.0
    %v2056 = vmax.f32 %v2052, 0.0
    %v2057 = vadd.f32 %v2053, %v1113
    %v2058 = vadd.f32 %v2054, %v1114
    %v2059 = vadd.f32 %v2055, %v1115
    %v2060 = vadd.f32 %v2056, %v1116
    %v2061 = vmax.f32 %v2057, 0.0
    %v2062 = vmax.f32 %v2058, 0.0
    %v2063 = vmax.f32 %v2059, 0.0
    %v2064 = vmax.f32 %v2060, 0.0
    %v2065 = vld [vmem:[%s1 + $0x248] sm:$0x1]
    %v2066 = vld [vmem:[%s1 + $0x250] sm:$0x1]
    %2068 = vset.pattern.permute.xlu0 0
    %2069 = vperm.xlu0 %2068, %v2066
    %v2070 = vpop.permute.xlu0 %2069
    %v2073 = vsel %vm91, %v2065, 0
    %v2076 = vsel %vm91, %v2061, 0
    %v2079 = vsel %vm91, %v2062, 0
    %v2082 = vsel %vm91, %v2063, 0
    %v2085 = vsel %vm91, %v2064, 0
    %2087 = vmatprep.subr.mxu0 0.0
    %2088 = vmatpush1.xpose.msra.mxu0 %v2076
    %2089 = vmatprep.subr.mxu0 0.0
    %2090 = vmatpush1.xpose.msra.mxu0 %v2079
    %2091 = vmatprep.subr.mxu0 0.0
    %2092 = vmatpush1.xpose.msra.mxu0 %v2082
    %2093 = vmatprep.subr.mxu0 0.0
    %2094 = vmatpush1.xpose.msra.mxu0 %v2085
    %2095 = vmatprep.subr.mxu0 0.0
    %2096 = vmatpush1.xpose.msra.mxu0 0.0
    %2097 = vmatprep.subr.mxu0 0.0
    %2098 = vmatpush1.xpose.msra.mxu0 0.0
    %2099 = vmatprep.subr.mxu0 0.0
    %2100 = vmatpush1.xpose.msra.mxu0 0.0
    %2101 = vmatprep.subr.mxu0 0.0
    %2102 = vmatpush1.xpose.msra.mxu0 0.0
    %2103 = vmatprep.subr.mxu0 0.0
    %2104 = vmatpush1.xpose.msra.mxu0 0.0
    %2105 = vmatprep.subr.mxu0 0.0
    %2106 = vmatpush1.xpose.msra.mxu0 0.0
    %2107 = vmatprep.subr.mxu0 0.0
    %2108 = vmatpush1.xpose.msra.mxu0 0.0
    %2109 = vmatprep.subr.mxu0 0.0
    %2110 = vmatpush1.xpose.msra.mxu0 0.0
    %2111 = vmatprep.subr.mxu0 0.0
    %2112 = vmatpush1.xpose.msra.mxu0 0.0
    %2113 = vmatprep.subr.mxu0 0.0
    %2114 = vmatpush1.xpose.msra.mxu0 0.0
    %2115 = vmatprep.subr.mxu0 0.0
    %2116 = vmatpush1.xpose.msra.mxu0 0.0
    %2117 = vmatprep.subr.mxu0 0.0
    %2118 = vmatpush1.xpose.msra.mxu0 0.0
    %2119 = vmatprep.subr.mxu0 0.0
    %2120 = vmatpush1.xpose.msra.mxu0 0.0
    %2121 = vmatprep.subr.mxu0 0.0
    %2122 = vmatpush1.xpose.msra.mxu0 0.0
    %2123 = vmatprep.subr.mxu0 0.0
    %2124 = vmatpush1.xpose.msra.mxu0 0.0
    %2125 = vmatprep.subr.mxu0 0.0
    %2126 = vmatpush1.xpose.msra.mxu0 0.0
    %2127 = vmatprep.subr.mxu0 0.0
    %2128 = vmatpush1.xpose.msra.mxu0 0.0
    %2129 = vmatprep.subr.mxu0 0.0
    %2130 = vmatpush1.xpose.msra.mxu0 0.0
    %2131 = vmatprep.subr.mxu0 0.0
    %2132 = vmatpush1.xpose.msra.mxu0 0.0
    %2133 = vmatprep.subr.mxu0 0.0
    %2134 = vmatpush1.xpose.msra.mxu0 0.0
    %2135 = vmatprep.subr.mxu0 0.0
    %2136 = vmatpush1.xpose.msra.mxu0 0.0
    %2137 = vmatprep.subr.mxu0 0.0
    %2138 = vmatpush1.xpose.msra.mxu0 0.0
    %2139 = vmatprep.subr.mxu0 0.0
    %2140 = vmatpush1.xpose.msra.mxu0 0.0
    %2141 = vmatprep.subr.mxu0 0.0
    %2142 = vmatpush1.xpose.msra.mxu0 0.0
    %2143 = vmatprep.subr.mxu0 0.0
    %2144 = vmatpush1.xpose.msra.mxu0 0.0
    %2145 = vmatprep.subr.mxu0 0.0
    %2146 = vmatpush1.xpose.msra.mxu0 0.0
    %2147 = vmatprep.subr.mxu0 0.0
    %2148 = vmatpush1.xpose.msra.mxu0 0.0
    %2149 = vmatprep.subr.mxu0 0.0
    %2150 = vmatpush1.xpose.msra.mxu0 0.0
    %2151 = vmatprep.mubr.f32.mxu0 0.0
    %2152 = vmatmul.mubr.f32.gmra.mrb[0].mxu0 %v2073
    %v2153 = vpop.f32.mrb[0].mxu0
    %v2154 = vadd.f32 %v2070, %v2153
    %v2155 = vpop.f32.mrb[0].mxu0
    %2156 = vdwg.mxu0
    %v2157 = vxor.u32 %v2154, 2147483648
    %v2158 = vmul.f32 %v2157, 1.442695
    %v2159 = vpow.pop %v2158
    %v2160 = vadd.f32 %v2159, 1.0
    %v2161 = vrcp.pop %v2160
    %v2162 = vmul.f32 1.0, %v2161
    %vm2163 = vcmask 253952
    %2164 = vst.msk [vmem:[#allocation2] sm:$0x1] %vm2163, %v2162
    // Predicated region
    $region10: #{tpu_custom_call.1} parent=1 // pred_check
      _
    $region11: #{tpu_custom_call.1} parent=1 // pred_check_branch
      %2166 = sbr.rel (0) target = $region13
    $region12: #{tpu_custom_call.1} parent=1 // pred_region
      %s2168 = ssub.s32 16, 16
      %2169 = vsyncadd [#allocation3], %s2168
      %s2171 = sshll.u32 [#allocation2], 4
      %s2172 = int_to_ptr.vmem [resolvable:$true] %s2171
      %2174 = dma.vmem_to_hbm [thread:$0]  %s2172, 16, %s2, [#allocation3]
    $region13: #{tpu_custom_call.1} parent=1 // pred_fallthru
      _
    // Predicated region
    $region14: #{tpu_custom_call.1} parent=1 // pred_check
      _
    $region15: #{tpu_custom_call.1} parent=1 // pred_check_branch
      %2176 = sbr.rel (0) target = $region17
    $region16: #{tpu_custom_call.1} parent=1 // pred_region
      %2177 = dma.done [#allocation3], 16
    $region17: #{tpu_custom_call.1} parent=1 // pred_fallthru
      _
    %2178 = vsyncpa [#allocation3], 1

</llo_original>
